<compile_context>
chip_gen: v7x
topology: tpu7x:2x2x1
jax: 0.10.0
libtpu: 0.0.40
codegen_flags: <defaults>
</compile_context>

<pallas_src>
import functools

import jax
import jax.numpy as jnp
from jax.experimental import pallas as pl
from jax.experimental.pallas import tpu as pltpu

LABEL_PAD = 128  # lane-dense padded label dimension


def _round_up(x, m):
    return ((x + m - 1) // m) * m


def fused_model_kernel(
    text_feat_ref, img_feat_ref,
    wt_ref, bt_ref,                              # text_model.trans Linear
    wi_ref, bi_ref,                              # img_model.trans  Linear
    wtc1_ref, btc1_ref, wtc2_ref, btc2_ref,      # text_classifier Linears
    wic1_ref, bic1_ref, wic2_ref, bic2_ref,      # img_classifier  Linears
    prob_ref,                                    # (TB, LABEL_PAD) f32 output
    *, num_labels,
):
    f32 = jnp.float32
    bf16 = jnp.bfloat16

    # Valid-label mask over the padded lane axis (pad lanes -> zero prob).
    lane_idx = jax.lax.broadcasted_iota(jnp.int32, prob_ref.shape, 1)
    label_mask = lane_idx < num_labels

    def masked_softmax(logits, exact=False):
        x = jnp.where(label_mask, logits, jnp.float32(-1e30))
        m = jnp.max(x, axis=1, keepdims=True)
        e = jnp.where(label_mask, jnp.exp(x - m), 0.0)
        denom = jnp.sum(e, axis=1, keepdims=True)
        if exact:
            return e / denom
        return e * pl.reciprocal(denom, approx=True)

    def head(feat_ref, w_ref, b_ref, w1_ref, b1_ref, w2_ref, b2_ref):
        # trans: Dropout(eval)=identity -> Linear -> ReLU (bf16 MXU, f32 accum)
        f = jnp.maximum(
            jnp.dot(feat_ref[...], w_ref[...],
                    preferred_element_type=f32) + b_ref[...], 0.0)
        # classifier: Dropout -> Linear -> ReLU -> Dropout -> Linear -> Softmax
        h = jnp.maximum(
            jnp.dot(f.astype(bf16), w1_ref[...],
                    preferred_element_type=f32) + b1_ref[...], 0.0)
        logits = jnp.dot(h.astype(bf16), w2_ref[...],
                         preferred_element_type=f32) + b2_ref[...]
        return masked_softmax(logits)

    text_prob = head(text_feat_ref, wt_ref, bt_ref,
                     wtc1_ref, btc1_ref, wtc2_ref, btc2_ref)
    img_prob = head(img_feat_ref, wi_ref, bi_ref,
                    wic1_ref, bic1_ref, wic2_ref, bic2_ref)

    # fuse: softmax(text_prob + img_prob, dim=1) over real labels only.
    # Exact reciprocal here (feeds returned prob + loss).
    prob_ref[...] = masked_softmax(text_prob + img_prob, exact=True)


def _vmem_capacity_bytes():
    try:
        return int(pltpu.get_tpu_info().vmem_capacity_bytes)
    except Exception:
        return 64 * 1024 * 1024  # conservative (v7x per-core physical VMEM)


def _choose_tb(batch, vmem_cap):
    # 512 fits comfortably on 128 MiB chips (v5e/v6e); cap at 256 on v7x.
    tb_max = 512 if vmem_cap >= 96 * 1024 * 1024 else 256
    if batch <= 32:
        return _round_up(batch, 16)  # single tile, bf16-sublane aligned
    # keep >= 2 batch tiles so the "parallel" axis can shard across v7x's 2 TCs
    return min(tb_max, _round_up(pl.cdiv(batch, 2), 16))


def run_model(text_feat, img_feat, params, labels=None, class_weights=None):
    """Fused forward pass.

    Returns (pred_labels[B], prob[B, num_labels], loss[]) when labels given,
    otherwise (pred_labels[B], prob[B, num_labels]).
    """
    batch, bert_hidden = text_feat.shape
    resnet_feat = img_feat.shape[1]
    num_labels = params["wtc2"].shape[1]

    vmem_cap = _vmem_capacity_bytes()
    tb = _choose_tb(batch, vmem_cap)
    b_pad = _round_up(batch, tb)
    grid = (b_pad // tb,)

    bf16 = jnp.bfloat16
    f32 = jnp.float32

    # bf16 MXU operands.  Batch pad fuses with the mandatory bf16 cast pass.
    text_p = jnp.pad(text_feat, ((0, b_pad - batch), (0, 0))).astype(bf16)
    img_p = jnp.pad(img_feat, ((0, b_pad - batch), (0, 0))).astype(bf16)

    wt = params["wt"].astype(bf16);   bt = params["bt"].astype(f32)
    wi = params["wi"].astype(bf16);   bi = params["bi"].astype(f32)
    wtc1 = params["wtc1"].astype(bf16); btc1 = params["btc1"].astype(f32)
    wic1 = params["wic1"].astype(bf16); bic1 = params["bic1"].astype(f32)
    # lane-dense label padding (num_labels -> 128) for an unmasked output vst
    lab_pad = ((0, 0), (0, LABEL_PAD - num_labels))
    wtc2 = jnp.pad(params["wtc2"], lab_pad).astype(bf16)
    btc2 = jnp.pad(params["btc2"], lab_pad).astype(f32)
    wic2 = jnp.pad(params["wic2"], lab_pad).astype(bf16)
    bic2 = jnp.pad(params["bic2"], lab_pad).astype(f32)

    weights = (wt, bt, wi, bi, wtc1, btc1, wtc2, btc2, wic1, bic1, wic2, bic2)

    vmem_limit = min(int(0.75 * vmem_cap), 96 * 1024 * 1024)

    def call(single_buffer_weights):
        if single_buffer_weights:
            # Constant block index -> double buffering buys nothing; halve the
            # VMEM held by the resident weights.
            def const_spec(a):
                return pl.BlockSpec(a.shape, lambda i: (0, 0),
                                    pipeline_mode=pl.Buffered(1))
        else:
            def const_spec(a):
                return pl.BlockSpec(a.shape, lambda i: (0, 0))

        in_specs = [
            pl.BlockSpec((tb, bert_hidden), lambda i: (i, 0)),
            pl.BlockSpec((tb, resnet_feat), lambda i: (i, 0)),
        ] + [const_spec(w) for w in weights]
        out_spec = pl.BlockSpec((tb, LABEL_PAD), lambda i: (i, 0))

        return pl.pallas_call(
            functools.partial(fused_model_kernel, num_labels=num_labels),
            grid=grid,
            out_shape=jax.ShapeDtypeStruct((b_pad, LABEL_PAD), jnp.float32),
            in_specs=in_specs,
            out_specs=out_spec,
            compiler_params=pltpu.CompilerParams(
                dimension_semantics=("parallel",),
                vmem_limit_bytes=vmem_limit),
        )(text_p, img_p, *weights)

    try:
        prob_padded = call(True)
    except Exception:
        # Fallback if this jax version rejects pipeline_mode=pl.Buffered(1).
        prob_padded = call(False)

    prob = prob_padded[:batch, :num_labels]
    pred = jnp.argmax(prob, axis=1)

    if labels is None:
        return pred, prob

    # Weighted CrossEntropyLoss applied to the ALREADY-SOFTMAXED prob vector
    # (i.e. a "double softmax") — this exactly mirrors the quirky PyTorch
    # module, which calls loss_func(prob_vec, labels).  Do not "fix".
    cw = class_weights.astype(jnp.float32)
    lse = jax.nn.logsumexp(prob, axis=1, keepdims=True)
    log_softmax = prob - lse
    onehot = jax.nn.one_hot(labels, num_labels, dtype=jnp.float32)
    logp_true = jnp.sum(onehot * log_softmax, axis=1)
    w_per_sample = cw[labels]
    loss = -jnp.sum(w_per_sample * logp_true) / jnp.sum(w_per_sample)
    return pred, prob, loss


def make_params(key, bert_hidden, resnet_feat, middle_hidden, out_hidden, num_labels):
    ks = jax.random.split(key, 12)
    s = 0.1

    def w(k, shp):
        return (s * jax.random.normal(k, shp)).astype(jnp.float32)

    return {
        "wt":   w(ks[0], (bert_hidden, middle_hidden)),
        "bt":   w(ks[1], (1, middle_hidden)),
        "wi":   w(ks[2], (resnet_feat, middle_hidden)),
        "bi":   w(ks[3], (1, middle_hidden)),
        "wtc1": w(ks[4], (middle_hidden, out_hidden)),
        "btc1": w(ks[5], (1, out_hidden)),
        "wtc2": w(ks[6], (out_hidden, num_labels)),
        "btc2": w(ks[7], (1, num_labels)),
        "wic1": w(ks[8], (middle_hidden, out_hidden)),
        "bic1": w(ks[9], (1, out_hidden)),
        "wic2": w(ks[10], (out_hidden, num_labels)),
        "bic2": w(ks[11], (1, num_labels)),
    }


if __name__ == "__main__":
    # Small, module-consistent sizes.
    batch = 2
    bert_hidden = 32      # stand-in for bert.config.hidden_size
    resnet_feat = 32      # stand-in for resnet50.fc.in_features
    middle_hidden = 32    # config.middle_hidden_size
    out_hidden = 32       # config.out_hidden_size
    num_labels = 4        # config.num_labels

    key = jax.random.PRNGKey(0)
    k_text, k_img, k_params, k_lab = jax.random.split(key, 4)

    # Synthetic backbone outputs (BERT pooler_output / ResNet50 pooled feature).
    text_feat = jax.random.normal(k_text, (batch, bert_hidden), dtype=jnp.float32)
    img_feat = jax.random.normal(k_img, (batch, resnet_feat), dtype=jnp.float32)
    labels = jax.random.randint(k_lab, (batch,), 0, num_labels, dtype=jnp.int32)

    params = make_params(k_params, bert_hidden, resnet_feat,
                         middle_hidden, out_hidden, num_labels)
    class_weights = jnp.array([1.0, 1.0, 1.5, 0.5], dtype=jnp.float32)  # config.loss_weight

    pred, prob, loss = run_model(text_feat, img_feat, params, labels, class_weights)
    jax.block_until_ready((pred, prob, loss))
    print("KERNEL_OK")
</pallas_src>

<mosaic_0001>
module attributes {stable_mosaic.version = 11 : i64} {
  func.func @fused_model_kernel(%arg0: i32, %arg1: memref<16x32xbf16, #tpu.memory_space<vmem>>, %arg2: memref<16x32xbf16, #tpu.memory_space<vmem>>, %arg3: memref<32x32xbf16, #tpu.memory_space<vmem>>, %arg4: memref<1x32xf32, #tpu.memory_space<vmem>>, %arg5: memref<32x32xbf16, #tpu.memory_space<vmem>>, %arg6: memref<1x32xf32, #tpu.memory_space<vmem>>, %arg7: memref<32x32xbf16, #tpu.memory_space<vmem>>, %arg8: memref<1x32xf32, #tpu.memory_space<vmem>>, %arg9: memref<32x128xbf16, #tpu.memory_space<vmem>>, %arg10: memref<1x128xf32, #tpu.memory_space<vmem>>, %arg11: memref<32x32xbf16, #tpu.memory_space<vmem>>, %arg12: memref<1x32xf32, #tpu.memory_space<vmem>>, %arg13: memref<32x128xbf16, #tpu.memory_space<vmem>>, %arg14: memref<1x128xf32, #tpu.memory_space<vmem>>, %arg15: memref<16x128xf32, #tpu.memory_space<vmem>>) attributes {dimension_semantics = [#tpu.dimension_semantics<parallel>], iteration_bounds = array<i64: 1>, scalar_prefetch = 0 : i64, scratch_operands = 0 : i64, tpu.core_type = #tpu.core_type<tc>, window_params = [{transform_indices = @transform_0, window_bounds = array<i64: 16, 32>}, {transform_indices = @transform_1, window_bounds = array<i64: 16, 32>}, {pipeline_mode = #tpu.pipeline_mode<synchronous>, transform_indices = @transform_2, window_bounds = array<i64: 32, 32>}, {pipeline_mode = #tpu.pipeline_mode<synchronous>, transform_indices = @transform_3, window_bounds = array<i64: 1, 32>}, {pipeline_mode = #tpu.pipeline_mode<synchronous>, transform_indices = @transform_4, window_bounds = array<i64: 32, 32>}, {pipeline_mode = #tpu.pipeline_mode<synchronous>, transform_indices = @transform_5, window_bounds = array<i64: 1, 32>}, {pipeline_mode = #tpu.pipeline_mode<synchronous>, transform_indices = @transform_6, window_bounds = array<i64: 32, 32>}, {pipeline_mode = #tpu.pipeline_mode<synchronous>, transform_indices = @transform_7, window_bounds = array<i64: 1, 32>}, {pipeline_mode = #tpu.pipeline_mode<synchronous>, transform_indices = @transform_8, window_bounds = array<i64: 32, 128>}, {pipeline_mode = #tpu.pipeline_mode<synchronous>, transform_indices = @transform_9, window_bounds = array<i64: 1, 128>}, {pipeline_mode = #tpu.pipeline_mode<synchronous>, transform_indices = @transform_10, window_bounds = array<i64: 32, 32>}, {pipeline_mode = #tpu.pipeline_mode<synchronous>, transform_indices = @transform_11, window_bounds = array<i64: 1, 32>}, {pipeline_mode = #tpu.pipeline_mode<synchronous>, transform_indices = @transform_12, window_bounds = array<i64: 32, 128>}, {pipeline_mode = #tpu.pipeline_mode<synchronous>, transform_indices = @transform_13, window_bounds = array<i64: 1, 128>}, {transform_indices = @transform_14, window_bounds = array<i64: 16, 128>}]} {
    %0 = tpu.iota {dimensions = array<i32: 1>} : vector<16x128xi32>
    %c4_i32 = arith.constant 4 : i32
    %1 = vector.broadcast %c4_i32 : i32 to vector<16x128xi32>
    %2 = arith.cmpi slt, %0, %1 : vector<16x128xi32>
    %c0 = arith.constant 0 : index
    %c0_0 = arith.constant 0 : index
    %3 = vector.load %arg1[%c0, %c0_0] : memref<16x32xbf16, #tpu.memory_space<vmem>>, vector<16x32xbf16>
    %c0_1 = arith.constant 0 : index
    %c0_2 = arith.constant 0 : index
    %4 = vector.load %arg3[%c0_1, %c0_2] : memref<32x32xbf16, #tpu.memory_space<vmem>>, vector<32x32xbf16>
    %cst = arith.constant dense<0.000000e+00> : vector<16x32xf32>
    %5 = tpu.matmul %3, %4, %cst {dimension_numbers = #tpu.dot_dimension_numbers<[1], [0], [0], [1], [0, 0, 1, 1], [], []>} : vector<16x32xbf16>, vector<32x32xbf16>, vector<16x32xf32> -> vector<16x32xf32>
    %c0_3 = arith.constant 0 : index
    %c0_4 = arith.constant 0 : index
    %6 = vector.load %arg4[%c0_3, %c0_4] : memref<1x32xf32, #tpu.memory_space<vmem>>, vector<1x32xf32>
    %7 = vector.broadcast %6 : vector<1x32xf32> to vector<16x32xf32>
    %8 = arith.addf %5, %7 : vector<16x32xf32>
    %cst_5 = arith.constant 0.000000e+00 : f32
    %9 = vector.broadcast %cst_5 : f32 to vector<16x32xf32>
    %10 = arith.maximumf %8, %9 : vector<16x32xf32>
    %11 = arith.truncf %10 : vector<16x32xf32> to vector<16x32xbf16>
    %c0_6 = arith.constant 0 : index
    %c0_7 = arith.constant 0 : index
    %12 = vector.load %arg7[%c0_6, %c0_7] : memref<32x32xbf16, #tpu.memory_space<vmem>>, vector<32x32xbf16>
    %cst_8 = arith.constant dense<0.000000e+00> : vector<16x32xf32>
    %13 = tpu.matmul %11, %12, %cst_8 {dimension_numbers = #tpu.dot_dimension_numbers<[1], [0], [0], [1], [0, 0, 1, 1], [], []>} : vector<16x32xbf16>, vector<32x32xbf16>, vector<16x32xf32> -> vector<16x32xf32>
    %c0_9 = arith.constant 0 : index
    %c0_10 = arith.constant 0 : index
    %14 = vector.load %arg8[%c0_9, %c0_10] : memref<1x32xf32, #tpu.memory_space<vmem>>, vector<1x32xf32>
    %15 = vector.broadcast %14 : vector<1x32xf32> to vector<16x32xf32>
    %16 = arith.addf %13, %15 : vector<16x32xf32>
    %cst_11 = arith.constant 0.000000e+00 : f32
    %17 = vector.broadcast %cst_11 : f32 to vector<16x32xf32>
    %18 = arith.maximumf %16, %17 : vector<16x32xf32>
    %19 = arith.truncf %18 : vector<16x32xf32> to vector<16x32xbf16>
    %c0_12 = arith.constant 0 : index
    %c0_13 = arith.constant 0 : index
    %20 = vector.load %arg9[%c0_12, %c0_13] : memref<32x128xbf16, #tpu.memory_space<vmem>>, vector<32x128xbf16>
    %cst_14 = arith.constant dense<0.000000e+00> : vector<16x128xf32>
    %21 = tpu.matmul %19, %20, %cst_14 {dimension_numbers = #tpu.dot_dimension_numbers<[1], [0], [0], [1], [0, 0, 1, 1], [], []>} : vector<16x32xbf16>, vector<32x128xbf16>, vector<16x128xf32> -> vector<16x128xf32>
    %c0_15 = arith.constant 0 : index
    %c0_16 = arith.constant 0 : index
    %22 = vector.load %arg10[%c0_15, %c0_16] : memref<1x128xf32, #tpu.memory_space<vmem>>, vector<1x128xf32>
    %23 = vector.broadcast %22 : vector<1x128xf32> to vector<16x128xf32>
    %24 = arith.addf %21, %23 : vector<16x128xf32>
    %cst_17 = arith.constant -1.000000e+30 : f32
    %25 = vector.broadcast %cst_17 : f32 to vector<16x128xf32>
    %26 = arith.select %2, %24, %25 : vector<16x128xi1>, vector<16x128xf32>
    %cst_18 = arith.constant dense<0xFF800000> : vector<16xf32>
    %27 = vector.multi_reduction <maximumf>, %26, %cst_18 [1] : vector<16x128xf32> to vector<16xf32>
    %28 = vector.shape_cast %27 : vector<16xf32> to vector<16x1xf32>
    %29 = vector.broadcast %28 : vector<16x1xf32> to vector<16x128xf32>
    %30 = arith.subf %26, %29 : vector<16x128xf32>
    %31 = math.exp %30 : vector<16x128xf32>
    %cst_19 = arith.constant 0.000000e+00 : f32
    %32 = vector.broadcast %cst_19 : f32 to vector<16x128xf32>
    %33 = arith.select %2, %31, %32 : vector<16x128xi1>, vector<16x128xf32>
    %cst_20 = arith.constant dense<0.000000e+00> : vector<16xf32>
    %34 = vector.multi_reduction <add>, %33, %cst_20 [1] : vector<16x128xf32> to vector<16xf32>
    %35 = vector.shape_cast %34 : vector<16xf32> to vector<16x1xf32>
    %36 = tpu.reciprocal %35 {approx = true} : vector<16x1xf32> -> vector<16x1xf32>
    %37 = vector.broadcast %36 : vector<16x1xf32> to vector<16x128xf32>
    %38 = arith.mulf %33, %37 : vector<16x128xf32>
    %c0_21 = arith.constant 0 : index
    %c0_22 = arith.constant 0 : index
    %39 = vector.load %arg2[%c0_21, %c0_22] : memref<16x32xbf16, #tpu.memory_space<vmem>>, vector<16x32xbf16>
    %c0_23 = arith.constant 0 : index
    %c0_24 = arith.constant 0 : index
    %40 = vector.load %arg5[%c0_23, %c0_24] : memref<32x32xbf16, #tpu.memory_space<vmem>>, vector<32x32xbf16>
    %cst_25 = arith.constant dense<0.000000e+00> : vector<16x32xf32>
    %41 = tpu.matmul %39, %40, %cst_25 {dimension_numbers = #tpu.dot_dimension_numbers<[1], [0], [0], [1], [0, 0, 1, 1], [], []>} : vector<16x32xbf16>, vector<32x32xbf16>, vector<16x32xf32> -> vector<16x32xf32>
    %c0_26 = arith.constant 0 : index
    %c0_27 = arith.constant 0 : index
    %42 = vector.load %arg6[%c0_26, %c0_27] : memref<1x32xf32, #tpu.memory_space<vmem>>, vector<1x32xf32>
    %43 = vector.broadcast %42 : vector<1x32xf32> to vector<16x32xf32>
    %44 = arith.addf %41, %43 : vector<16x32xf32>
    %cst_28 = arith.constant 0.000000e+00 : f32
    %45 = vector.broadcast %cst_28 : f32 to vector<16x32xf32>
    %46 = arith.maximumf %44, %45 : vector<16x32xf32>
    %47 = arith.truncf %46 : vector<16x32xf32> to vector<16x32xbf16>
    %c0_29 = arith.constant 0 : index
    %c0_30 = arith.constant 0 : index
    %48 = vector.load %arg11[%c0_29, %c0_30] : memref<32x32xbf16, #tpu.memory_space<vmem>>, vector<32x32xbf16>
    %cst_31 = arith.constant dense<0.000000e+00> : vector<16x32xf32>
    %49 = tpu.matmul %47, %48, %cst_31 {dimension_numbers = #tpu.dot_dimension_numbers<[1], [0], [0], [1], [0, 0, 1, 1], [], []>} : vector<16x32xbf16>, vector<32x32xbf16>, vector<16x32xf32> -> vector<16x32xf32>
    %c0_32 = arith.constant 0 : index
    %c0_33 = arith.constant 0 : index
    %50 = vector.load %arg12[%c0_32, %c0_33] : memref<1x32xf32, #tpu.memory_space<vmem>>, vector<1x32xf32>
    %51 = vector.broadcast %50 : vector<1x32xf32> to vector<16x32xf32>
    %52 = arith.addf %49, %51 : vector<16x32xf32>
    %cst_34 = arith.constant 0.000000e+00 : f32
    %53 = vector.broadcast %cst_34 : f32 to vector<16x32xf32>
    %54 = arith.maximumf %52, %53 : vector<16x32xf32>
    %55 = arith.truncf %54 : vector<16x32xf32> to vector<16x32xbf16>
    %c0_35 = arith.constant 0 : index
    %c0_36 = arith.constant 0 : index
    %56 = vector.load %arg13[%c0_35, %c0_36] : memref<32x128xbf16, #tpu.memory_space<vmem>>, vector<32x128xbf16>
    %cst_37 = arith.constant dense<0.000000e+00> : vector<16x128xf32>
    %57 = tpu.matmul %55, %56, %cst_37 {dimension_numbers = #tpu.dot_dimension_numbers<[1], [0], [0], [1], [0, 0, 1, 1], [], []>} : vector<16x32xbf16>, vector<32x128xbf16>, vector<16x128xf32> -> vector<16x128xf32>
    %c0_38 = arith.constant 0 : index
    %c0_39 = arith.constant 0 : index
    %58 = vector.load %arg14[%c0_38, %c0_39] : memref<1x128xf32, #tpu.memory_space<vmem>>, vector<1x128xf32>
    %59 = vector.broadcast %58 : vector<1x128xf32> to vector<16x128xf32>
    %60 = arith.addf %57, %59 : vector<16x128xf32>
    %cst_40 = arith.constant -1.000000e+30 : f32
    %61 = vector.broadcast %cst_40 : f32 to vector<16x128xf32>
    %62 = arith.select %2, %60, %61 : vector<16x128xi1>, vector<16x128xf32>
    %cst_41 = arith.constant dense<0xFF800000> : vector<16xf32>
    %63 = vector.multi_reduction <maximumf>, %62, %cst_41 [1] : vector<16x128xf32> to vector<16xf32>
    %64 = vector.shape_cast %63 : vector<16xf32> to vector<16x1xf32>
    %65 = vector.broadcast %64 : vector<16x1xf32> to vector<16x128xf32>
    %66 = arith.subf %62, %65 : vector<16x128xf32>
    %67 = math.exp %66 : vector<16x128xf32>
    %cst_42 = arith.constant 0.000000e+00 : f32
    %68 = vector.broadcast %cst_42 : f32 to vector<16x128xf32>
    %69 = arith.select %2, %67, %68 : vector<16x128xi1>, vector<16x128xf32>
    %cst_43 = arith.constant dense<0.000000e+00> : vector<16xf32>
    %70 = vector.multi_reduction <add>, %69, %cst_43 [1] : vector<16x128xf32> to vector<16xf32>
    %71 = vector.shape_cast %70 : vector<16xf32> to vector<16x1xf32>
    %72 = tpu.reciprocal %71 {approx = true} : vector<16x1xf32> -> vector<16x1xf32>
    %73 = vector.broadcast %72 : vector<16x1xf32> to vector<16x128xf32>
    %74 = arith.mulf %69, %73 : vector<16x128xf32>
    %75 = arith.addf %38, %74 : vector<16x128xf32>
    %cst_44 = arith.constant -1.000000e+30 : f32
    %76 = vector.broadcast %cst_44 : f32 to vector<16x128xf32>
    %77 = arith.select %2, %75, %76 : vector<16x128xi1>, vector<16x128xf32>
    %cst_45 = arith.constant dense<0xFF800000> : vector<16xf32>
    %78 = vector.multi_reduction <maximumf>, %77, %cst_45 [1] : vector<16x128xf32> to vector<16xf32>
    %79 = vector.shape_cast %78 : vector<16xf32> to vector<16x1xf32>
    %80 = vector.broadcast %79 : vector<16x1xf32> to vector<16x128xf32>
    %81 = arith.subf %77, %80 : vector<16x128xf32>
    %82 = math.exp %81 : vector<16x128xf32>
    %cst_46 = arith.constant 0.000000e+00 : f32
    %83 = vector.broadcast %cst_46 : f32 to vector<16x128xf32>
    %84 = arith.select %2, %82, %83 : vector<16x128xi1>, vector<16x128xf32>
    %cst_47 = arith.constant dense<0.000000e+00> : vector<16xf32>
    %85 = vector.multi_reduction <add>, %84, %cst_47 [1] : vector<16x128xf32> to vector<16xf32>
    %86 = vector.shape_cast %85 : vector<16xf32> to vector<16x1xf32>
    %87 = vector.broadcast %86 : vector<16x1xf32> to vector<16x128xf32>
    %88 = arith.divf %84, %87 : vector<16x128xf32>
    %c0_48 = arith.constant 0 : index
    %c0_49 = arith.constant 0 : index
    %89 = vector.load %arg15[%c0_48, %c0_49] : memref<16x128xf32, #tpu.memory_space<vmem>>, vector<16x128xf32>
    tpu.vector_store %arg15[%c0_48, %c0_49], %88 {strides = array<i32>} : memref<16x128xf32, #tpu.memory_space<vmem>>, vector<16x128xf32>,
    return
  }
  func.func @transform_0(%arg0: i32) -> (i32, i32) {
    %c0_i32 = arith.constant 0 : i32
    %c0_i32_0 = arith.constant 0 : i32
    return %arg0, %c0_i32 : i32, i32
  }
  func.func @transform_1(%arg0: i32) -> (i32, i32) {
    %c0_i32 = arith.constant 0 : i32
    %c0_i32_0 = arith.constant 0 : i32
    return %arg0, %c0_i32 : i32, i32
  }
  func.func @transform_2(%arg0: i32) -> (i32, i32) {
    %c0_i32 = arith.constant 0 : i32
    %c0_i32_0 = arith.constant 0 : i32
    %c0_i32_1 = arith.constant 0 : i32
    return %c0_i32, %c0_i32_0 : i32, i32
  }
  func.func @transform_3(%arg0: i32) -> (i32, i32) {
    %c0_i32 = arith.constant 0 : i32
    %c0_i32_0 = arith.constant 0 : i32
    %c0_i32_1 = arith.constant 0 : i32
    return %c0_i32, %c0_i32_0 : i32, i32
  }
  func.func @transform_4(%arg0: i32) -> (i32, i32) {
    %c0_i32 = arith.constant 0 : i32
    %c0_i32_0 = arith.constant 0 : i32
    %c0_i32_1 = arith.constant 0 : i32
    return %c0_i32, %c0_i32_0 : i32, i32
  }
  func.func @transform_5(%arg0: i32) -> (i32, i32) {
    %c0_i32 = arith.constant 0 : i32
    %c0_i32_0 = arith.constant 0 : i32
    %c0_i32_1 = arith.constant 0 : i32
    return %c0_i32, %c0_i32_0 : i32, i32
  }
  func.func @transform_6(%arg0: i32) -> (i32, i32) {
    %c0_i32 = arith.constant 0 : i32
    %c0_i32_0 = arith.constant 0 : i32
    %c0_i32_1 = arith.constant 0 : i32
    return %c0_i32, %c0_i32_0 : i32, i32
  }
  func.func @transform_7(%arg0: i32) -> (i32, i32) {
    %c0_i32 = arith.constant 0 : i32
    %c0_i32_0 = arith.constant 0 : i32
    %c0_i32_1 = arith.constant 0 : i32
    return %c0_i32, %c0_i32_0 : i32, i32
  }
  func.func @transform_8(%arg0: i32) -> (i32, i32) {
    %c0_i32 = arith.constant 0 : i32
    %c0_i32_0 = arith.constant 0 : i32
    %c0_i32_1 = arith.constant 0 : i32
    return %c0_i32, %c0_i32_0 : i32, i32
  }
  func.func @transform_9(%arg0: i32) -> (i32, i32) {
    %c0_i32 = arith.constant 0 : i32
    %c0_i32_0 = arith.constant 0 : i32
    %c0_i32_1 = arith.constant 0 : i32
    return %c0_i32, %c0_i32_0 : i32, i32
  }
  func.func @transform_10(%arg0: i32) -> (i32, i32) {
    %c0_i32 = arith.constant 0 : i32
    %c0_i32_0 = arith.constant 0 : i32
    %c0_i32_1 = arith.constant 0 : i32
    return %c0_i32, %c0_i32_0 : i32, i32
  }
  func.func @transform_11(%arg0: i32) -> (i32, i32) {
    %c0_i32 = arith.constant 0 : i32
    %c0_i32_0 = arith.constant 0 : i32
    %c0_i32_1 = arith.constant 0 : i32
    return %c0_i32, %c0_i32_0 : i32, i32
  }
  func.func @transform_12(%arg0: i32) -> (i32, i32) {
    %c0_i32 = arith.constant 0 : i32
    %c0_i32_0 = arith.constant 0 : i32
    %c0_i32_1 = arith.constant 0 : i32
    return %c0_i32, %c0_i32_0 : i32, i32
  }
  func.func @transform_13(%arg0: i32) -> (i32, i32) {
    %c0_i32 = arith.constant 0 : i32
    %c0_i32_0 = arith.constant 0 : i32
    %c0_i32_1 = arith.constant 0 : i32
    return %c0_i32, %c0_i32_0 : i32, i32
  }
  func.func @transform_14(%arg0: i32) -> (i32, i32) {
    %c0_i32 = arith.constant 0 : i32
    %c0_i32_0 = arith.constant 0 : i32
    return %arg0, %c0_i32 : i32, i32
  }
}

module attributes {stable_mosaic.version = 11 : i64} {
  func.func @fused_model_kernel(%arg0: i32, %arg1: memref<16x32xbf16, #tpu.memory_space<vmem>>, %arg2: memref<16x32xbf16, #tpu.memory_space<vmem>>, %arg3: memref<32x32xbf16, #tpu.memory_space<vmem>>, %arg4: memref<1x32xf32, #tpu.memory_space<vmem>>, %arg5: memref<32x32xbf16, #tpu.memory_space<vmem>>, %arg6: memref<1x32xf32, #tpu.memory_space<vmem>>, %arg7: memref<32x32xbf16, #tpu.memory_space<vmem>>, %arg8: memref<1x32xf32, #tpu.memory_space<vmem>>, %arg9: memref<32x128xbf16, #tpu.memory_space<vmem>>, %arg10: memref<1x128xf32, #tpu.memory_space<vmem>>, %arg11: memref<32x32xbf16, #tpu.memory_space<vmem>>, %arg12: memref<1x32xf32, #tpu.memory_space<vmem>>, %arg13: memref<32x128xbf16, #tpu.memory_space<vmem>>, %arg14: memref<1x128xf32, #tpu.memory_space<vmem>>, %arg15: memref<16x128xf32, #tpu.memory_space<vmem>>) attributes {dimension_semantics = [#tpu.dimension_semantics<parallel>], iteration_bounds = array<i64: 1>, scalar_prefetch = 0 : i64, scratch_operands = 0 : i64, tpu.core_type = #tpu.core_type<tc>, window_params = [{transform_indices = @transform_0, window_bounds = array<i64: 16, 32>}, {transform_indices = @transform_1, window_bounds = array<i64: 16, 32>}, {pipeline_mode = #tpu.pipeline_mode<synchronous>, transform_indices = @transform_2, window_bounds = array<i64: 32, 32>}, {pipeline_mode = #tpu.pipeline_mode<synchronous>, transform_indices = @transform_3, window_bounds = array<i64: 1, 32>}, {pipeline_mode = #tpu.pipeline_mode<synchronous>, transform_indices = @transform_4, window_bounds = array<i64: 32, 32>}, {pipeline_mode = #tpu.pipeline_mode<synchronous>, transform_indices = @transform_5, window_bounds = array<i64: 1, 32>}, {pipeline_mode = #tpu.pipeline_mode<synchronous>, transform_indices = @transform_6, window_bounds = array<i64: 32, 32>}, {pipeline_mode = #tpu.pipeline_mode<synchronous>, transform_indices = @transform_7, window_bounds = array<i64: 1, 32>}, {pipeline_mode = #tpu.pipeline_mode<synchronous>, transform_indices = @transform_8, window_bounds = array<i64: 32, 128>}, {pipeline_mode = #tpu.pipeline_mode<synchronous>, transform_indices = @transform_9, window_bounds = array<i64: 1, 128>}, {pipeline_mode = #tpu.pipeline_mode<synchronous>, transform_indices = @transform_10, window_bounds = array<i64: 32, 32>}, {pipeline_mode = #tpu.pipeline_mode<synchronous>, transform_indices = @transform_11, window_bounds = array<i64: 1, 32>}, {pipeline_mode = #tpu.pipeline_mode<synchronous>, transform_indices = @transform_12, window_bounds = array<i64: 32, 128>}, {pipeline_mode = #tpu.pipeline_mode<synchronous>, transform_indices = @transform_13, window_bounds = array<i64: 1, 128>}, {transform_indices = @transform_14, window_bounds = array<i64: 16, 128>}]} {
    %0 = tpu.iota {dimensions = array<i32: 1>} : vector<16x128xi32>
    %c4_i32 = arith.constant 4 : i32
    %1 = vector.broadcast %c4_i32 : i32 to vector<16x128xi32>
    %2 = arith.cmpi slt, %0, %1 : vector<16x128xi32>
    %c0 = arith.constant 0 : index
    %c0_0 = arith.constant 0 : index
    %3 = vector.load %arg1[%c0, %c0_0] : memref<16x32xbf16, #tpu.memory_space<vmem>>, vector<16x32xbf16>
    %c0_1 = arith.constant 0 : index
    %c0_2 = arith.constant 0 : index
    %4 = vector.load %arg3[%c0_1, %c0_2] : memref<32x32xbf16, #tpu.memory_space<vmem>>, vector<32x32xbf16>
    %cst = arith.constant dense<0.000000e+00> : vector<16x32xf32>
    %5 = tpu.matmul %3, %4, %cst {dimension_numbers = #tpu.dot_dimension_numbers<[1], [0], [0], [1], [0, 0, 1, 1], [], []>} : vector<16x32xbf16>, vector<32x32xbf16>, vector<16x32xf32> -> vector<16x32xf32>
    %c0_3 = arith.constant 0 : index
    %c0_4 = arith.constant 0 : index
    %6 = vector.load %arg4[%c0_3, %c0_4] : memref<1x32xf32, #tpu.memory_space<vmem>>, vector<1x32xf32>
    %7 = vector.broadcast %6 : vector<1x32xf32> to vector<16x32xf32>
    %8 = arith.addf %5, %7 : vector<16x32xf32>
    %cst_5 = arith.constant 0.000000e+00 : f32
    %9 = vector.broadcast %cst_5 : f32 to vector<16x32xf32>
    %10 = arith.maximumf %8, %9 : vector<16x32xf32>
    %11 = arith.truncf %10 : vector<16x32xf32> to vector<16x32xbf16>
    %c0_6 = arith.constant 0 : index
    %c0_7 = arith.constant 0 : index
    %12 = vector.load %arg7[%c0_6, %c0_7] : memref<32x32xbf16, #tpu.memory_space<vmem>>, vector<32x32xbf16>
    %cst_8 = arith.constant dense<0.000000e+00> : vector<16x32xf32>
    %13 = tpu.matmul %11, %12, %cst_8 {dimension_numbers = #tpu.dot_dimension_numbers<[1], [0], [0], [1], [0, 0, 1, 1], [], []>} : vector<16x32xbf16>, vector<32x32xbf16>, vector<16x32xf32> -> vector<16x32xf32>
    %c0_9 = arith.constant 0 : index
    %c0_10 = arith.constant 0 : index
    %14 = vector.load %arg8[%c0_9, %c0_10] : memref<1x32xf32, #tpu.memory_space<vmem>>, vector<1x32xf32>
    %15 = vector.broadcast %14 : vector<1x32xf32> to vector<16x32xf32>
    %16 = arith.addf %13, %15 : vector<16x32xf32>
    %cst_11 = arith.constant 0.000000e+00 : f32
    %17 = vector.broadcast %cst_11 : f32 to vector<16x32xf32>
    %18 = arith.maximumf %16, %17 : vector<16x32xf32>
    %19 = arith.truncf %18 : vector<16x32xf32> to vector<16x32xbf16>
    %c0_12 = arith.constant 0 : index
    %c0_13 = arith.constant 0 : index
    %20 = vector.load %arg9[%c0_12, %c0_13] : memref<32x128xbf16, #tpu.memory_space<vmem>>, vector<32x128xbf16>
    %cst_14 = arith.constant dense<0.000000e+00> : vector<16x128xf32>
    %21 = tpu.matmul %19, %20, %cst_14 {dimension_numbers = #tpu.dot_dimension_numbers<[1], [0], [0], [1], [0, 0, 1, 1], [], []>} : vector<16x32xbf16>, vector<32x128xbf16>, vector<16x128xf32> -> vector<16x128xf32>
    %c0_15 = arith.constant 0 : index
    %c0_16 = arith.constant 0 : index
    %22 = vector.load %arg10[%c0_15, %c0_16] : memref<1x128xf32, #tpu.memory_space<vmem>>, vector<1x128xf32>
    %23 = vector.broadcast %22 : vector<1x128xf32> to vector<16x128xf32>
    %24 = arith.addf %21, %23 : vector<16x128xf32>
    %cst_17 = arith.constant -1.000000e+30 : f32
    %25 = vector.broadcast %cst_17 : f32 to vector<16x128xf32>
    %26 = arith.select %2, %24, %25 : vector<16x128xi1>, vector<16x128xf32>
    %cst_18 = arith.constant dense<0xFF800000> : vector<16xf32>
    %27 = vector.multi_reduction <maximumf>, %26, %cst_18 [1] : vector<16x128xf32> to vector<16xf32>
    %28 = vector.shape_cast %27 : vector<16xf32> to vector<16x1xf32>
    %29 = vector.broadcast %28 : vector<16x1xf32> to vector<16x128xf32>
    %30 = arith.subf %26, %29 : vector<16x128xf32>
    %31 = math.exp %30 : vector<16x128xf32>
    %cst_19 = arith.constant 0.000000e+00 : f32
    %32 = vector.broadcast %cst_19 : f32 to vector<16x128xf32>
    %33 = arith.select %2, %31, %32 : vector<16x128xi1>, vector<16x128xf32>
    %cst_20 = arith.constant dense<0.000000e+00> : vector<16xf32>
    %34 = vector.multi_reduction <add>, %33, %cst_20 [1] : vector<16x128xf32> to vector<16xf32>
    %35 = vector.shape_cast %34 : vector<16xf32> to vector<16x1xf32>
    %36 = tpu.reciprocal %35 {approx = true} : vector<16x1xf32> -> vector<16x1xf32>
    %37 = vector.broadcast %36 : vector<16x1xf32> to vector<16x128xf32>
    %38 = arith.mulf %33, %37 : vector<16x128xf32>
    %c0_21 = arith.constant 0 : index
    %c0_22 = arith.constant 0 : index
    %39 = vector.load %arg2[%c0_21, %c0_22] : memref<16x32xbf16, #tpu.memory_space<vmem>>, vector<16x32xbf16>
    %c0_23 = arith.constant 0 : index
    %c0_24 = arith.constant 0 : index
    %40 = vector.load %arg5[%c0_23, %c0_24] : memref<32x32xbf16, #tpu.memory_space<vmem>>, vector<32x32xbf16>
    %cst_25 = arith.constant dense<0.000000e+00> : vector<16x32xf32>
    %41 = tpu.matmul %39, %40, %cst_25 {dimension_numbers = #tpu.dot_dimension_numbers<[1], [0], [0], [1], [0, 0, 1, 1], [], []>} : vector<16x32xbf16>, vector<32x32xbf16>, vector<16x32xf32> -> vector<16x32xf32>
    %c0_26 = arith.constant 0 : index
    %c0_27 = arith.constant 0 : index
    %42 = vector.load %arg6[%c0_26, %c0_27] : memref<1x32xf32, #tpu.memory_space<vmem>>, vector<1x32xf32>
    %43 = vector.broadcast %42 : vector<1x32xf32> to vector<16x32xf32>
    %44 = arith.addf %41, %43 : vector<16x32xf32>
    %cst_28 = arith.constant 0.000000e+00 : f32
    %45 = vector.broadcast %cst_28 : f32 to vector<16x32xf32>
    %46 = arith.maximumf %44, %45 : vector<16x32xf32>
    %47 = arith.truncf %46 : vector<16x32xf32> to vector<16x32xbf16>
    %c0_29 = arith.constant 0 : index
    %c0_30 = arith.constant 0 : index
    %48 = vector.load %arg11[%c0_29, %c0_30] : memref<32x32xbf16, #tpu.memory_space<vmem>>, vector<32x32xbf16>
    %cst_31 = arith.constant dense<0.000000e+00> : vector<16x32xf32>
    %49 = tpu.matmul %47, %48, %cst_31 {dimension_numbers = #tpu.dot_dimension_numbers<[1], [0], [0], [1], [0, 0, 1, 1], [], []>} : vector<16x32xbf16>, vector<32x32xbf16>, vector<16x32xf32> -> vector<16x32xf32>
    %c0_32 = arith.constant 0 : index
    %c0_33 = arith.constant 0 : index
    %50 = vector.load %arg12[%c0_32, %c0_33] : memref<1x32xf32, #tpu.memory_space<vmem>>, vector<1x32xf32>
    %51 = vector.broadcast %50 : vector<1x32xf32> to vector<16x32xf32>
    %52 = arith.addf %49, %51 : vector<16x32xf32>
    %cst_34 = arith.constant 0.000000e+00 : f32
    %53 = vector.broadcast %cst_34 : f32 to vector<16x32xf32>
    %54 = arith.maximumf %52, %53 : vector<16x32xf32>
    %55 = arith.truncf %54 : vector<16x32xf32> to vector<16x32xbf16>
    %c0_35 = arith.constant 0 : index
    %c0_36 = arith.constant 0 : index
    %56 = vector.load %arg13[%c0_35, %c0_36] : memref<32x128xbf16, #tpu.memory_space<vmem>>, vector<32x128xbf16>
    %cst_37 = arith.constant dense<0.000000e+00> : vector<16x128xf32>
    %57 = tpu.matmul %55, %56, %cst_37 {dimension_numbers = #tpu.dot_dimension_numbers<[1], [0], [0], [1], [0, 0, 1, 1], [], []>} : vector<16x32xbf16>, vector<32x128xbf16>, vector<16x128xf32> -> vector<16x128xf32>
    %c0_38 = arith.constant 0 : index
    %c0_39 = arith.constant 0 : index
    %58 = vector.load %arg14[%c0_38, %c0_39] : memref<1x128xf32, #tpu.memory_space<vmem>>, vector<1x128xf32>
    %59 = vector.broadcast %58 : vector<1x128xf32> to vector<16x128xf32>
    %60 = arith.addf %57, %59 : vector<16x128xf32>
    %cst_40 = arith.constant -1.000000e+30 : f32
    %61 = vector.broadcast %cst_40 : f32 to vector<16x128xf32>
    %62 = arith.select %2, %60, %61 : vector<16x128xi1>, vector<16x128xf32>
    %cst_41 = arith.constant dense<0xFF800000> : vector<16xf32>
    %63 = vector.multi_reduction <maximumf>, %62, %cst_41 [1] : vector<16x128xf32> to vector<16xf32>
    %64 = vector.shape_cast %63 : vector<16xf32> to vector<16x1xf32>
    %65 = vector.broadcast %64 : vector<16x1xf32> to vector<16x128xf32>
    %66 = arith.subf %62, %65 : vector<16x128xf32>
    %67 = math.exp %66 : vector<16x128xf32>
    %cst_42 = arith.constant 0.000000e+00 : f32
    %68 = vector.broadcast %cst_42 : f32 to vector<16x128xf32>
    %69 = arith.select %2, %67, %68 : vector<16x128xi1>, vector<16x128xf32>
    %cst_43 = arith.constant dense<0.000000e+00> : vector<16xf32>
    %70 = vector.multi_reduction <add>, %69, %cst_43 [1] : vector<16x128xf32> to vector<16xf32>
    %71 = vector.shape_cast %70 : vector<16xf32> to vector<16x1xf32>
    %72 = tpu.reciprocal %71 {approx = true} : vector<16x1xf32> -> vector<16x1xf32>
    %73 = vector.broadcast %72 : vector<16x1xf32> to vector<16x128xf32>
    %74 = arith.mulf %69, %73 : vector<16x128xf32>
    %75 = arith.addf %38, %74 : vector<16x128xf32>
    %cst_44 = arith.constant -1.000000e+30 : f32
    %76 = vector.broadcast %cst_44 : f32 to vector<16x128xf32>
    %77 = arith.select %2, %75, %76 : vector<16x128xi1>, vector<16x128xf32>
    %cst_45 = arith.constant dense<0xFF800000> : vector<16xf32>
    %78 = vector.multi_reduction <maximumf>, %77, %cst_45 [1] : vector<16x128xf32> to vector<16xf32>
    %79 = vector.shape_cast %78 : vector<16xf32> to vector<16x1xf32>
    %80 = vector.broadcast %79 : vector<16x1xf32> to vector<16x128xf32>
    %81 = arith.subf %77, %80 : vector<16x128xf32>
    %82 = math.exp %81 : vector<16x128xf32>
    %cst_46 = arith.constant 0.000000e+00 : f32
    %83 = vector.broadcast %cst_46 : f32 to vector<16x128xf32>
    %84 = arith.select %2, %82, %83 : vector<16x128xi1>, vector<16x128xf32>
    %cst_47 = arith.constant dense<0.000000e+00> : vector<16xf32>
    %85 = vector.multi_reduction <add>, %84, %cst_47 [1] : vector<16x128xf32> to vector<16xf32>
    %86 = vector.shape_cast %85 : vector<16xf32> to vector<16x1xf32>
    %87 = vector.broadcast %86 : vector<16x1xf32> to vector<16x128xf32>
    %88 = arith.divf %84, %87 : vector<16x128xf32>
    %c0_48 = arith.constant 0 : index
    %c0_49 = arith.constant 0 : index
    %89 = vector.load %arg15[%c0_48, %c0_49] : memref<16x128xf32, #tpu.memory_space<vmem>>, vector<16x128xf32>
    tpu.vector_store %arg15[%c0_48, %c0_49], %88 {strides = array<i32>} : memref<16x128xf32, #tpu.memory_space<vmem>>, vector<16x128xf32>,
    return
  }
  func.func @transform_0(%arg0: i32) -> (i32, i32) {
    %c0_i32 = arith.constant 0 : i32
    %c0_i32_0 = arith.constant 0 : i32
    return %arg0, %c0_i32 : i32, i32
  }
  func.func @transform_1(%arg0: i32) -> (i32, i32) {
    %c0_i32 = arith.constant 0 : i32
    %c0_i32_0 = arith.constant 0 : i32
    return %arg0, %c0_i32 : i32, i32
  }
  func.func @transform_2(%arg0: i32) -> (i32, i32) {
    %c0_i32 = arith.constant 0 : i32
    %c0_i32_0 = arith.constant 0 : i32
    %c0_i32_1 = arith.constant 0 : i32
    return %c0_i32, %c0_i32_0 : i32, i32
  }
  func.func @transform_3(%arg0: i32) -> (i32, i32) {
    %c0_i32 = arith.constant 0 : i32
    %c0_i32_0 = arith.constant 0 : i32
    %c0_i32_1 = arith.constant 0 : i32
    return %c0_i32, %c0_i32_0 : i32, i32
  }
  func.func @transform_4(%arg0: i32) -> (i32, i32) {
    %c0_i32 = arith.constant 0 : i32
    %c0_i32_0 = arith.constant 0 : i32
    %c0_i32_1 = arith.constant 0 : i32
    return %c0_i32, %c0_i32_0 : i32, i32
  }
  func.func @transform_5(%arg0: i32) -> (i32, i32) {
    %c0_i32 = arith.constant 0 : i32
    %c0_i32_0 = arith.constant 0 : i32
    %c0_i32_1 = arith.constant 0 : i32
    return %c0_i32, %c0_i32_0 : i32, i32
  }
  func.func @transform_6(%arg0: i32) -> (i32, i32) {
    %c0_i32 = arith.constant 0 : i32
    %c0_i32_0 = arith.constant 0 : i32
    %c0_i32_1 = arith.constant 0 : i32
    return %c0_i32, %c0_i32_0 : i32, i32
  }
  func.func @transform_7(%arg0: i32) -> (i32, i32) {
    %c0_i32 = arith.constant 0 : i32
    %c0_i32_0 = arith.constant 0 : i32
    %c0_i32_1 = arith.constant 0 : i32
    return %c0_i32, %c0_i32_0 : i32, i32
  }
  func.func @transform_8(%arg0: i32) -> (i32, i32) {
    %c0_i32 = arith.constant 0 : i32
    %c0_i32_0 = arith.constant 0 : i32
    %c0_i32_1 = arith.constant 0 : i32
    return %c0_i32, %c0_i32_0 : i32, i32
  }
  func.func @transform_9(%arg0: i32) -> (i32, i32) {
    %c0_i32 = arith.constant 0 : i32
    %c0_i32_0 = arith.constant 0 : i32
    %c0_i32_1 = arith.constant 0 : i32
    return %c0_i32, %c0_i32_0 : i32, i32
  }
  func.func @transform_10(%arg0: i32) -> (i32, i32) {
    %c0_i32 = arith.constant 0 : i32
    %c0_i32_0 = arith.constant 0 : i32
    %c0_i32_1 = arith.constant 0 : i32
    return %c0_i32, %c0_i32_0 : i32, i32
  }
  func.func @transform_11(%arg0: i32) -> (i32, i32) {
    %c0_i32 = arith.constant 0 : i32
    %c0_i32_0 = arith.constant 0 : i32
    %c0_i32_1 = arith.constant 0 : i32
    return %c0_i32, %c0_i32_0 : i32, i32
  }
  func.func @transform_12(%arg0: i32) -> (i32, i32) {
    %c0_i32 = arith.constant 0 : i32
    %c0_i32_0 = arith.constant 0 : i32
    %c0_i32_1 = arith.constant 0 : i32
    return %c0_i32, %c0_i32_0 : i32, i32
  }
  func.func @transform_13(%arg0: i32) -> (i32, i32) {
    %c0_i32 = arith.constant 0 : i32
    %c0_i32_0 = arith.constant 0 : i32
    %c0_i32_1 = arith.constant 0 : i32
    return %c0_i32, %c0_i32_0 : i32, i32
  }
  func.func @transform_14(%arg0: i32) -> (i32, i32) {
    %c0_i32 = arith.constant 0 : i32
    %c0_i32_0 = arith.constant 0 : i32
    return %arg0, %c0_i32 : i32, i32
  }
}

</mosaic_0001>

<llo_original>
// kernel: tpu_custom_call.1
$region0: #{tpu_custom_call.1}
  #allocation0 [shape = 'u32[]', space=smem, size = 0x4, offset = 0x4, fixed_abs, tag = 'smem constant byte address 0x4 - core index']
  #allocation1 [shape = 'u32[144,128]{1,0:T(1,128)}', space=vmem, size = 0x12000, scoped, tag = 'internal scratch']
  %s0 = inlined_call_operand.hbm [shape: bf16[16,32], index: 0, kind: input, shape index: {}]
  %s1 = inlined_call_operand.hbm [shape: bf16[16,32], index: 1, kind: input, shape index: {}]
  %s2 = inlined_call_operand.hbm [shape: bf16[32,32], index: 2, kind: input, shape index: {}]
  %s3 = inlined_call_operand.vmem [shape: f32[1,32], index: 3, kind: input, shape index: {}]
  %s4 = inlined_call_operand.hbm [shape: bf16[32,32], index: 4, kind: input, shape index: {}]
  %s5 = inlined_call_operand.vmem [shape: f32[1,32], index: 5, kind: input, shape index: {}]
  %s6 = inlined_call_operand.vmem [shape: bf16[32,32], index: 6, kind: input, shape index: {}]
  %s7 = inlined_call_operand.hbm [shape: f32[1,32], index: 7, kind: input, shape index: {}]
  %s8 = inlined_call_operand.hbm [shape: bf16[32,128], index: 8, kind: input, shape index: {}]
  %s9 = inlined_call_operand.hbm [shape: f32[1,128], index: 9, kind: input, shape index: {}]
  %s10 = inlined_call_operand.vmem [shape: bf16[32,32], index: 10, kind: input, shape index: {}]
  %s11 = inlined_call_operand.vmem [shape: f32[1,32], index: 11, kind: input, shape index: {}]
  %s12 = inlined_call_operand.hbm [shape: bf16[32,128], index: 12, kind: input, shape index: {}]
  %s13 = inlined_call_operand.vmem [shape: f32[1,128], index: 13, kind: input, shape index: {}]
  %s14 = inlined_call_operand.hbm [shape: f32[16,128], index: 14, kind: output, shape index: {}]
  %s15 = sld [smem:[#allocation0]]
  $region98: #{tpu_custom_call.1} parent=0
    _
  %s17 = ssub.s32 1, %s15
  %s18 = scalar_select 0, %s17, %s15
  $region1: #{tpu_custom_call.1} parent=0
    #allocation2 [shape = 'u8[4096]{0}', space=vmem, size = 0x1000, scoped, tag = 'input window, operand 0, single buffered']
    #allocation3 [shape = 's32[1]{0}', space=sflag, size = 0x4, scoped, tag = 'scoped memory for tpu_custom_call.1']
    #allocation4 [shape = 's32[1]{0}', space=sflag, size = 0x4, scoped, tag = 'scoped memory for tpu_custom_call.1']
    #allocation5 [shape = 'u8[4096]{0}', space=vmem, size = 0x1000, scoped, tag = 'input window, operand 1, single buffered']
    #allocation6 [shape = 's32[1]{0}', space=sflag, size = 0x4, scoped, tag = 'scoped memory for tpu_custom_call.1']
    #allocation7 [shape = 'u8[8192]{0}', space=vmem, size = 0x2000, scoped, tag = 'input window, operand 2, single buffered']
    #allocation8 [shape = 'u8[8192]{0}', space=vmem, size = 0x2000, scoped, tag = 'input window, operand 4, single buffered']
    #allocation9 [shape = 's32[1]{0}', space=sflag, size = 0x4, scoped, tag = 'scoped memory for tpu_custom_call.1']
    #allocation10 [shape = 'u8[512]{0}', space=vmem, size = 0x400, scoped, tag = 'input window, operand 7, single buffered']
    #allocation11 [shape = 'u8[8192]{0}', space=vmem, size = 0x2000, scoped, tag = 'input window, operand 8, single buffered']
    #allocation12 [shape = 's32[1]{0}', space=sflag, size = 0x4, scoped, tag = 'scoped memory for tpu_custom_call.1']
    #allocation13 [shape = 'u8[512]{0}', space=vmem, size = 0x400, scoped, tag = 'input window, operand 9, single buffered']
    #allocation14 [shape = 'u8[8192]{0}', space=vmem, size = 0x2000, scoped, tag = 'input window, operand 12, single buffered']
    #allocation15 [shape = 's32[1]{0}', space=sflag, size = 0x4, scoped, tag = 'scoped memory for tpu_custom_call.1']
    #allocation16 [shape = 'u8[8192]{0}', space=vmem, size = 0x2000, scoped, tag = 'output window, operand 0, single buffered']
    %19 = vsyncpa [#allocation3], 0
    %20 = vsyncpa [#allocation6], 0
    %21 = vsyncpa [#allocation9], 0
    %22 = vsyncpa [#allocation12], 0
    %23 = vsyncpa [#allocation15], 0
    %24 = vsyncpa [#allocation4], 0
    // Predicated region
    $region2: #{tpu_custom_call.1} parent=1 // pred_check
      _
    $region3: #{tpu_custom_call.1} parent=1 // pred_check_branch
      %26 = sbr.rel (0) target = $region5
    $region4: #{tpu_custom_call.1} parent=1 // pred_region
      %s28 = ssub.s32 128, 128
      %29 = vsyncadd [#allocation3], %s28
      %s30 = sshll.u32 [#allocation2], 4
      %s31 = int_to_ptr.vmem [resolvable:$true] %s30
      %36 = dma.hbm_to_vmem [thread:$0]  %s0, 128, %s31, [#allocation3], 64, 64, 4
    $region5: #{tpu_custom_call.1} parent=1 // pred_fallthru
      _
    // Predicated region
    $region6: #{tpu_custom_call.1} parent=1 // pred_check
      _
    $region7: #{tpu_custom_call.1} parent=1 // pred_check_branch
      %38 = sbr.rel (0) target = $region9
    $region8: #{tpu_custom_call.1} parent=1 // pred_region
      %s40 = ssub.s32 128, 128
      %41 = vsyncadd [#allocation6], %s40
      %s42 = sshll.u32 [#allocation5], 4
      %s43 = int_to_ptr.vmem [resolvable:$true] %s42
      %48 = dma.hbm_to_vmem [thread:$0]  %s1, 128, %s43, [#allocation6], 64, 64, 4
    $region9: #{tpu_custom_call.1} parent=1 // pred_fallthru
      _
    // Predicated region
    $region10: #{tpu_custom_call.1} parent=1 // pred_check
      _
    $region11: #{tpu_custom_call.1} parent=1 // pred_check_branch
      %50 = sbr.rel (0) target = $region13
    $region12: #{tpu_custom_call.1} parent=1 // pred_region
      %s52 = ssub.s32 256, 256
      %53 = vsyncadd [#allocation6], %s52
      %s54 = sshll.u32 [#allocation7], 4
      %s55 = int_to_ptr.vmem [resolvable:$true] %s54
      %60 = dma.hbm_to_vmem [thread:$0]  %s2, 256, %s55, [#allocation6], 64, 64, 4
    $region13: #{tpu_custom_call.1} parent=1 // pred_fallthru
      _
    // Predicated region
    $region14: #{tpu_custom_call.1} parent=1 // pred_check
      _
    $region15: #{tpu_custom_call.1} parent=1 // pred_check_branch
      %62 = sbr.rel (0) target = $region17
    $region16: #{tpu_custom_call.1} parent=1 // pred_region
      _
    $region17: #{tpu_custom_call.1} parent=1 // pred_fallthru
      _
    // Predicated region
    $region18: #{tpu_custom_call.1} parent=1 // pred_check
      _
    $region19: #{tpu_custom_call.1} parent=1 // pred_check_branch
      %64 = sbr.rel (0) target = $region21
    $region20: #{tpu_custom_call.1} parent=1 // pred_region
      %s66 = ssub.s32 256, 256
      %67 = vsyncadd [#allocation9], %s66
      %s68 = sshll.u32 [#allocation8], 4
      %s69 = int_to_ptr.vmem [resolvable:$true] %s68
      %74 = dma.hbm_to_vmem [thread:$0]  %s4, 256, %s69, [#allocation9], 64, 64, 4
    $region21: #{tpu_custom_call.1} parent=1 // pred_fallthru
      _
    // Predicated region
    $region22: #{tpu_custom_call.1} parent=1 // pred_check
      _
    $region23: #{tpu_custom_call.1} parent=1 // pred_check_branch
      %76 = sbr.rel (0) target = $region25
    $region24: #{tpu_custom_call.1} parent=1 // pred_region
      _
    $region25: #{tpu_custom_call.1} parent=1 // pred_fallthru
      _
    // Predicated region
    $region26: #{tpu_custom_call.1} parent=1 // pred_check
      _
    $region27: #{tpu_custom_call.1} parent=1 // pred_check_branch
      %78 = sbr.rel (0) target = $region29
    $region28: #{tpu_custom_call.1} parent=1 // pred_region
      _
    $region29: #{tpu_custom_call.1} parent=1 // pred_fallthru
      _
    // Predicated region
    $region30: #{tpu_custom_call.1} parent=1 // pred_check
      _
    $region31: #{tpu_custom_call.1} parent=1 // pred_check_branch
      %80 = sbr.rel (0) target = $region33
    $region32: #{tpu_custom_call.1} parent=1 // pred_region
      %s82 = ssub.s32 16, 16
      %83 = vsyncadd [#allocation9], %s82
      %s85 = sshll.u32 [#allocation10], 4
      %s86 = int_to_ptr.vmem [resolvable:$true] %s85
      %88 = dma.hbm_to_vmem [thread:$0]  %s7, 16, %s86, [#allocation9]
    $region33: #{tpu_custom_call.1} parent=1 // pred_fallthru
      _
    // Predicated region
    $region34: #{tpu_custom_call.1} parent=1 // pred_check
      _
    $region35: #{tpu_custom_call.1} parent=1 // pred_check_branch
      %90 = sbr.rel (0) target = $region37
    $region36: #{tpu_custom_call.1} parent=1 // pred_region
      %s92 = ssub.s32 256, 256
      %93 = vsyncadd [#allocation12], %s92
      %s94 = sshll.u32 [#allocation11], 4
      %s95 = int_to_ptr.vmem [resolvable:$true] %s94
      %100 = dma.hbm_to_vmem [thread:$0]  %s8, 256, %s95, [#allocation12], 64, 64, 4
    $region37: #{tpu_custom_call.1} parent=1 // pred_fallthru
      _
    // Predicated region
    $region38: #{tpu_custom_call.1} parent=1 // pred_check
      _
    $region39: #{tpu_custom_call.1} parent=1 // pred_check_branch
      %102 = sbr.rel (0) target = $region41
    $region40: #{tpu_custom_call.1} parent=1 // pred_region
      %s104 = ssub.s32 16, 16
      %105 = vsyncadd [#allocation12], %s104
      %s107 = sshll.u32 [#allocation13], 4
      %s108 = int_to_ptr.vmem [resolvable:$true] %s107
      %110 = dma.hbm_to_vmem [thread:$0]  %s9, 16, %s108, [#allocation12]
    $region41: #{tpu_custom_call.1} parent=1 // pred_fallthru
      _
    // Predicated region
    $region42: #{tpu_custom_call.1} parent=1 // pred_check
      _
    $region43: #{tpu_custom_call.1} parent=1 // pred_check_branch
      %112 = sbr.rel (0) target = $region45
    $region44: #{tpu_custom_call.1} parent=1 // pred_region
      _
    $region45: #{tpu_custom_call.1} parent=1 // pred_fallthru
      _
    // Predicated region
    $region46: #{tpu_custom_call.1} parent=1 // pred_check
      _
    $region47: #{tpu_custom_call.1} parent=1 // pred_check_branch
      %114 = sbr.rel (0) target = $region49
    $region48: #{tpu_custom_call.1} parent=1 // pred_region
      _
    $region49: #{tpu_custom_call.1} parent=1 // pred_fallthru
      _
    // Predicated region
    $region50: #{tpu_custom_call.1} parent=1 // pred_check
      _
    $region51: #{tpu_custom_call.1} parent=1 // pred_check_branch
      %116 = sbr.rel (0) target = $region53
    $region52: #{tpu_custom_call.1} parent=1 // pred_region
      %s118 = ssub.s32 256, 256
      %119 = vsyncadd [#allocation15], %s118
      %s120 = sshll.u32 [#allocation14], 4
      %s121 = int_to_ptr.vmem [resolvable:$true] %s120
      %126 = dma.hbm_to_vmem [thread:$0]  %s12, 256, %s121, [#allocation15], 64, 64, 4
    $region53: #{tpu_custom_call.1} parent=1 // pred_fallthru
      _
    // Predicated region
    $region54: #{tpu_custom_call.1} parent=1 // pred_check
      _
    $region55: #{tpu_custom_call.1} parent=1 // pred_check_branch
      %128 = sbr.rel (0) target = $region57
    $region56: #{tpu_custom_call.1} parent=1 // pred_region
      _
    $region57: #{tpu_custom_call.1} parent=1 // pred_fallthru
      _
    // Predicated region
    $region58: #{tpu_custom_call.1} parent=1 // pred_check
      _
    $region59: #{tpu_custom_call.1} parent=1 // pred_check_branch
      %130 = sbr.rel (0) target = $region61
    $region60: #{tpu_custom_call.1} parent=1 // pred_region
      %131 = dma.done [#allocation3], 128
    $region61: #{tpu_custom_call.1} parent=1 // pred_fallthru
      _
    // Predicated region
    $region62: #{tpu_custom_call.1} parent=1 // pred_check
      _
    $region63: #{tpu_custom_call.1} parent=1 // pred_check_branch
      %133 = sbr.rel (0) target = $region65
    $region64: #{tpu_custom_call.1} parent=1 // pred_region
      %134 = dma.done [#allocation6], 128
    $region65: #{tpu_custom_call.1} parent=1 // pred_fallthru
      _
    // Predicated region
    $region66: #{tpu_custom_call.1} parent=1 // pred_check
      _
    $region67: #{tpu_custom_call.1} parent=1 // pred_check_branch
      %136 = sbr.rel (0) target = $region69
    $region68: #{tpu_custom_call.1} parent=1 // pred_region
      %137 = dma.done [#allocation6], 256
    $region69: #{tpu_custom_call.1} parent=1 // pred_fallthru
      _
    // Predicated region
    $region70: #{tpu_custom_call.1} parent=1 // pred_check
      _
    $region71: #{tpu_custom_call.1} parent=1 // pred_check_branch
      %139 = sbr.rel (0) target = $region73
    $region72: #{tpu_custom_call.1} parent=1 // pred_region
      %140 = dma.done [#allocation9], 256
    $region73: #{tpu_custom_call.1} parent=1 // pred_fallthru
      _
    // Predicated region
    $region74: #{tpu_custom_call.1} parent=1 // pred_check
      _
    $region75: #{tpu_custom_call.1} parent=1 // pred_check_branch
      %142 = sbr.rel (0) target = $region77
    $region76: #{tpu_custom_call.1} parent=1 // pred_region
      %143 = dma.done [#allocation9], 16
    $region77: #{tpu_custom_call.1} parent=1 // pred_fallthru
      _
    // Predicated region
    $region78: #{tpu_custom_call.1} parent=1 // pred_check
      _
    $region79: #{tpu_custom_call.1} parent=1 // pred_check_branch
      %145 = sbr.rel (0) target = $region81
    $region80: #{tpu_custom_call.1} parent=1 // pred_region
      %146 = dma.done [#allocation12], 256
    $region81: #{tpu_custom_call.1} parent=1 // pred_fallthru
      _
    // Predicated region
    $region82: #{tpu_custom_call.1} parent=1 // pred_check
      _
    $region83: #{tpu_custom_call.1} parent=1 // pred_check_branch
      %148 = sbr.rel (0) target = $region85
    $region84: #{tpu_custom_call.1} parent=1 // pred_region
      %149 = dma.done [#allocation12], 16
    $region85: #{tpu_custom_call.1} parent=1 // pred_fallthru
      _
    // Predicated region
    $region86: #{tpu_custom_call.1} parent=1 // pred_check
      _
    $region87: #{tpu_custom_call.1} parent=1 // pred_check_branch
      %151 = sbr.rel (0) target = $region89
    $region88: #{tpu_custom_call.1} parent=1 // pred_region
      %152 = dma.done [#allocation15], 256
    $region89: #{tpu_custom_call.1} parent=1 // pred_fallthru
      _
    %v154 = vlaneseq
    %v155 = vand.u32 %v154, 127
    %vm156 = vcmp.lt.s32.totalorder %v155, 4
    %v157 = vld [vmem:[#allocation2] sm:$0xf]
    %v158 = vld [vmem:[#allocation2 + $0x4] sm:$0xf]
    %v159 = vld [vmem:[#allocation7] sm:$0xf]
    %v160 = vld [vmem:[#allocation7 + $0x4] sm:$0xf]
    %v161 = vld [vmem:[#allocation7 + $0x8] sm:$0xf]
    %v162 = vld [vmem:[#allocation7 + $0xc] sm:$0xf]
    %v163 = vld [vmem:[%s3] sm:$0x1]
    %v165 = vlaneseq
    %v166 = vshrl.u32 %v165, 7
    %v167 = vsub.s32 0, %v166
    %v168 = vrot.slane %v163, %v167
    %v172 = vunpack.c.l.b16 %v157
    %v173 = vunpack.c.l.b16 %v158
    %v174 = vpack.c.b16 %v173, %v172
    %v179 = vunpack.c.l.b16 %v159
    %v180 = vunpack.c.l.b16 %v160
    %v181 = vunpack.c.l.b16 %v161
    %v182 = vunpack.c.l.b16 %v162
    %v183 = vpack.c.b16 %v180, %v179
    %v184 = vpack.c.b16 %v182, %v181
    %vm187 = vcmask 261120
    %v189 = vsel %vm187, %v174, 0
    %191 = vmatprep.subr.bf16.mxu0 0
    %192 = vmatpush1.bf16.msra.mxu0 %v183
    %193 = vmatprep.subr.bf16.mxu0 0
    %194 = vmatpush1.bf16.msra.mxu0 %v184
    %195 = vmatprep.subr.bf16.mxu0 0
    %196 = vmatpush1.bf16.msra.mxu0 0
    %197 = vmatprep.subr.bf16.mxu0 0
    %198 = vmatpush1.bf16.msra.mxu0 0
    %199 = vmatprep.subr.bf16.mxu0 0
    %200 = vmatpush1.bf16.msra.mxu0 0
    %201 = vmatprep.subr.bf16.mxu0 0
    %202 = vmatpush1.bf16.msra.mxu0 0
    %203 = vmatprep.subr.bf16.mxu0 0
    %204 = vmatpush1.bf16.msra.mxu0 0
    %205 = vmatprep.subr.bf16.mxu0 0
    %206 = vmatpush1.bf16.msra.mxu0 0
    %207 = vmatprep.subr.bf16.mxu0 0
    %208 = vmatpush1.bf16.msra.mxu0 0
    %209 = vmatprep.subr.bf16.mxu0 0
    %210 = vmatpush1.bf16.msra.mxu0 0
    %211 = vmatprep.subr.bf16.mxu0 0
    %212 = vmatpush1.bf16.msra.mxu0 0
    %213 = vmatprep.subr.bf16.mxu0 0
    %214 = vmatpush1.bf16.msra.mxu0 0
    %215 = vmatprep.subr.bf16.mxu0 0
    %216 = vmatpush1.bf16.msra.mxu0 0
    %217 = vmatprep.subr.bf16.mxu0 0
    %218 = vmatpush1.bf16.msra.mxu0 0
    %219 = vmatprep.subr.bf16.mxu0 0
    %220 = vmatpush1.bf16.msra.mxu0 0
    %221 = vmatprep.subr.bf16.mxu0 0
    %222 = vmatpush1.bf16.msra.mxu0 0
    %223 = vmatprep.mubr.bf16.mxu0 0
    %224 = vmatmul.mubr.bf16.gmra.mrb[0].mxu0 %v189
    %v225 = vpop.f32.mrb[0].mxu0
    %v226 = vadd.f32 %v168, %v225
    %v227 = vpop.f32.mrb[0].mxu0
    %v228 = vpop.f32.mrb[0].mxu0
    %v229 = vadd.f32 %v168, %v228
    %v230 = vpop.f32.mrb[0].mxu0
    %231 = vdwg.mxu0
    %v232 = vmax.f32 %v226, 0.0
    %v233 = vmax.f32 %v229, 0.0
    %v234 = vpack.c.bf16 %v233, %v232
    %v235 = vld [vmem:[%s6] sm:$0xf]
    %v236 = vld [vmem:[%s6 + $0x4] sm:$0xf]
    %v237 = vld [vmem:[%s6 + $0x8] sm:$0xf]
    %v238 = vld [vmem:[%s6 + $0xc] sm:$0xf]
    %v239 = vld [vmem:[#allocation10] sm:$0x1]
    %v241 = vlaneseq
    %v242 = vshrl.u32 %v241, 7
    %v243 = vsub.s32 0, %v242
    %v244 = vrot.slane %v239, %v243
    %v250 = vunpack.c.l.b16 %v235
    %v251 = vunpack.c.l.b16 %v236
    %v252 = vunpack.c.l.b16 %v237
    %v253 = vunpack.c.l.b16 %v238
    %v254 = vpack.c.b16 %v251, %v250
    %v255 = vpack.c.b16 %v253, %v252
    %v259 = vsel %vm187, %v234, 0
    %261 = vmatprep.subr.bf16.mxu0 0
    %262 = vmatpush1.bf16.msra.mxu0 %v254
    %263 = vmatprep.subr.bf16.mxu0 0
    %264 = vmatpush1.bf16.msra.mxu0 %v255
    %265 = vmatprep.subr.bf16.mxu0 0
    %266 = vmatpush1.bf16.msra.mxu0 0
    %267 = vmatprep.subr.bf16.mxu0 0
    %268 = vmatpush1.bf16.msra.mxu0 0
    %269 = vmatprep.subr.bf16.mxu0 0
    %270 = vmatpush1.bf16.msra.mxu0 0
    %271 = vmatprep.subr.bf16.mxu0 0
    %272 = vmatpush1.bf16.msra.mxu0 0
    %273 = vmatprep.subr.bf16.mxu0 0
    %274 = vmatpush1.bf16.msra.mxu0 0
    %275 = vmatprep.subr.bf16.mxu0 0
    %276 = vmatpush1.bf16.msra.mxu0 0
    %277 = vmatprep.subr.bf16.mxu0 0
    %278 = vmatpush1.bf16.msra.mxu0 0
    %279 = vmatprep.subr.bf16.mxu0 0
    %280 = vmatpush1.bf16.msra.mxu0 0
    %281 = vmatprep.subr.bf16.mxu0 0
    %282 = vmatpush1.bf16.msra.mxu0 0
    %283 = vmatprep.subr.bf16.mxu0 0
    %284 = vmatpush1.bf16.msra.mxu0 0
    %285 = vmatprep.subr.bf16.mxu0 0
    %286 = vmatpush1.bf16.msra.mxu0 0
    %287 = vmatprep.subr.bf16.mxu0 0
    %288 = vmatpush1.bf16.msra.mxu0 0
    %289 = vmatprep.subr.bf16.mxu0 0
    %290 = vmatpush1.bf16.msra.mxu0 0
    %291 = vmatprep.subr.bf16.mxu0 0
    %292 = vmatpush1.bf16.msra.mxu0 0
    %293 = vmatprep.mubr.bf16.mxu0 0
    %294 = vmatmul.mubr.bf16.gmra.mrb[0].mxu0 %v259
    %v295 = vpop.f32.mrb[0].mxu0
    %v296 = vadd.f32 %v244, %v295
    %v297 = vpop.f32.mrb[0].mxu0
    %v298 = vpop.f32.mrb[0].mxu0
    %v299 = vadd.f32 %v244, %v298
    %v300 = vpop.f32.mrb[0].mxu0
    %301 = vdwg.mxu0
    %v302 = vmax.f32 %v296, 0.0
    %v303 = vmax.f32 %v299, 0.0
    %v304 = vpack.c.bf16 %v303, %v302
    %v305 = vld [vmem:[#allocation11] sm:$0xf]
    %v306 = vld [vmem:[#allocation11 + $0x4] sm:$0xf]
    %v307 = vld [vmem:[#allocation11 + $0x8] sm:$0xf]
    %v308 = vld [vmem:[#allocation11 + $0xc] sm:$0xf]
    %v309 = vld [vmem:[#allocation13] sm:$0x1]
    %v311 = vlaneseq
    %v312 = vshrl.u32 %v311, 7
    %v313 = vsub.s32 0, %v312
    %v314 = vrot.slane %v309, %v313
    %v320 = vunpack.c.l.b16 %v305
    %v321 = vunpack.c.l.b16 %v306
    %v322 = vunpack.c.l.b16 %v307
    %v323 = vunpack.c.l.b16 %v308
    %v324 = vpack.c.b16 %v321, %v320
    %v325 = vpack.c.b16 %v323, %v322
    %v329 = vsel %vm187, %v304, 0
    %331 = vmatprep.subr.bf16.mxu0 0
    %332 = vmatpush1.bf16.msra.mxu0 %v324
    %333 = vmatprep.subr.bf16.mxu0 0
    %334 = vmatpush1.bf16.msra.mxu0 %v325
    %335 = vmatprep.subr.bf16.mxu0 0
    %336 = vmatpush1.bf16.msra.mxu0 0
    %337 = vmatprep.subr.bf16.mxu0 0
    %338 = vmatpush1.bf16.msra.mxu0 0
    %339 = vmatprep.subr.bf16.mxu0 0
    %340 = vmatpush1.bf16.msra.mxu0 0
    %341 = vmatprep.subr.bf16.mxu0 0
    %342 = vmatpush1.bf16.msra.mxu0 0
    %343 = vmatprep.subr.bf16.mxu0 0
    %344 = vmatpush1.bf16.msra.mxu0 0
    %345 = vmatprep.subr.bf16.mxu0 0
    %346 = vmatpush1.bf16.msra.mxu0 0
    %347 = vmatprep.subr.bf16.mxu0 0
    %348 = vmatpush1.bf16.msra.mxu0 0
    %349 = vmatprep.subr.bf16.mxu0 0
    %350 = vmatpush1.bf16.msra.mxu0 0
    %351 = vmatprep.subr.bf16.mxu0 0
    %352 = vmatpush1.bf16.msra.mxu0 0
    %353 = vmatprep.subr.bf16.mxu0 0
    %354 = vmatpush1.bf16.msra.mxu0 0
    %355 = vmatprep.subr.bf16.mxu0 0
    %356 = vmatpush1.bf16.msra.mxu0 0
    %357 = vmatprep.subr.bf16.mxu0 0
    %358 = vmatpush1.bf16.msra.mxu0 0
    %359 = vmatprep.subr.bf16.mxu0 0
    %360 = vmatpush1.bf16.msra.mxu0 0
    %361 = vmatprep.subr.bf16.mxu0 0
    %362 = vmatpush1.bf16.msra.mxu0 0
    %363 = vmatprep.mubr.bf16.mxu0 0
    %364 = vmatmul.mubr.bf16.gmra.mrb[0].mxu0 %v329
    %v365 = vpop.f32.mrb[0].mxu0
    %v366 = vadd.f32 %v314, %v365
    %v367 = vpop.f32.mrb[0].mxu0
    %v368 = vpop.f32.mrb[0].mxu0
    %v369 = vadd.f32 %v314, %v368
    %v370 = vpop.f32.mrb[0].mxu0
    %371 = vdwg.mxu0
    %v372 = vsel %vm156, %v366, -1e+30
    %v373 = vsel %vm156, %v369, -1e+30
    %374 = vmax.xlane.f32.xlu0 %v372
    %v375 = vpop.xlane.xlu0 %374
    %376 = vmax.xlane.f32.xlu0 %v373
    %v377 = vpop.xlane.xlu0 %376
    %v378 = vsub.f32 %v372, %v375
    %v379 = vsub.f32 %v373, %v377
    %v380 = vmul.f32 %v378, 1.442695
    %v381 = vpow.pop %v380
    %v382 = vmul.f32 %v379, 1.442695
    %v383 = vpow.pop %v382
    %v384 = vsel %vm156, %v381, 0.0
    %v385 = vsel %vm156, %v383, 0.0
    %386 = vadd.xlane.f32.xlu0 %v384
    %v387 = vpop.xlane.xlu0 %386
    %388 = vadd.xlane.f32.xlu0 %v385
    %v389 = vpop.xlane.xlu0 %388
    %v390 = vrcp.pop %v387
    %v391 = vrcp.pop %v389
    %v392 = vmul.f32 %v384, %v390
    %v393 = vmul.f32 %v385, %v391
    %v394 = vld [vmem:[#allocation5] sm:$0xf]
    %v395 = vld [vmem:[#allocation5 + $0x4] sm:$0xf]
    %v396 = vld [vmem:[#allocation8] sm:$0xf]
    %v397 = vld [vmem:[#allocation8 + $0x4] sm:$0xf]
    %v398 = vld [vmem:[#allocation8 + $0x8] sm:$0xf]
    %v399 = vld [vmem:[#allocation8 + $0xc] sm:$0xf]
    %v400 = vld [vmem:[%s5] sm:$0x1]
    %v402 = vlaneseq
    %v403 = vshrl.u32 %v402, 7
    %v404 = vsub.s32 0, %v403
    %v405 = vrot.slane %v400, %v404
    %v409 = vunpack.c.l.b16 %v394
    %v410 = vunpack.c.l.b16 %v395
    %v411 = vpack.c.b16 %v410, %v409
    %v416 = vunpack.c.l.b16 %v396
    %v417 = vunpack.c.l.b16 %v397
    %v418 = vunpack.c.l.b16 %v398
    %v419 = vunpack.c.l.b16 %v399
    %v420 = vpack.c.b16 %v417, %v416
    %v421 = vpack.c.b16 %v419, %v418
    %v425 = vsel %vm187, %v411, 0
    %427 = vmatprep.subr.bf16.mxu0 0
    %428 = vmatpush1.bf16.msra.mxu0 %v420
    %429 = vmatprep.subr.bf16.mxu0 0
    %430 = vmatpush1.bf16.msra.mxu0 %v421
    %431 = vmatprep.subr.bf16.mxu0 0
    %432 = vmatpush1.bf16.msra.mxu0 0
    %433 = vmatprep.subr.bf16.mxu0 0
    %434 = vmatpush1.bf16.msra.mxu0 0
    %435 = vmatprep.subr.bf16.mxu0 0
    %436 = vmatpush1.bf16.msra.mxu0 0
    %437 = vmatprep.subr.bf16.mxu0 0
    %438 = vmatpush1.bf16.msra.mxu0 0
    %439 = vmatprep.subr.bf16.mxu0 0
    %440 = vmatpush1.bf16.msra.mxu0 0
    %441 = vmatprep.subr.bf16.mxu0 0
    %442 = vmatpush1.bf16.msra.mxu0 0
    %443 = vmatprep.subr.bf16.mxu0 0
    %444 = vmatpush1.bf16.msra.mxu0 0
    %445 = vmatprep.subr.bf16.mxu0 0
    %446 = vmatpush1.bf16.msra.mxu0 0
    %447 = vmatprep.subr.bf16.mxu0 0
    %448 = vmatpush1.bf16.msra.mxu0 0
    %449 = vmatprep.subr.bf16.mxu0 0
    %450 = vmatpush1.bf16.msra.mxu0 0
    %451 = vmatprep.subr.bf16.mxu0 0
    %452 = vmatpush1.bf16.msra.mxu0 0
    %453 = vmatprep.subr.bf16.mxu0 0
    %454 = vmatpush1.bf16.msra.mxu0 0
    %455 = vmatprep.subr.bf16.mxu0 0
    %456 = vmatpush1.bf16.msra.mxu0 0
    %457 = vmatprep.subr.bf16.mxu0 0
    %458 = vmatpush1.bf16.msra.mxu0 0
    %459 = vmatprep.mubr.bf16.mxu0 0
    %460 = vmatmul.mubr.bf16.gmra.mrb[0].mxu0 %v425
    %v461 = vpop.f32.mrb[0].mxu0
    %v462 = vadd.f32 %v405, %v461
    %v463 = vpop.f32.mrb[0].mxu0
    %v464 = vpop.f32.mrb[0].mxu0
    %v465 = vadd.f32 %v405, %v464
    %v466 = vpop.f32.mrb[0].mxu0
    %467 = vdwg.mxu0
    %v468 = vmax.f32 %v462, 0.0
    %v469 = vmax.f32 %v465, 0.0
    %v470 = vpack.c.bf16 %v469, %v468
    %v471 = vld [vmem:[%s10] sm:$0xf]
    %v472 = vld [vmem:[%s10 + $0x4] sm:$0xf]
    %v473 = vld [vmem:[%s10 + $0x8] sm:$0xf]
    %v474 = vld [vmem:[%s10 + $0xc] sm:$0xf]
    %v475 = vld [vmem:[%s11] sm:$0x1]
    %v477 = vlaneseq
    %v478 = vshrl.u32 %v477, 7
    %v479 = vsub.s32 0, %v478
    %v480 = vrot.slane %v475, %v479
    %v486 = vunpack.c.l.b16 %v471
    %v487 = vunpack.c.l.b16 %v472
    %v488 = vunpack.c.l.b16 %v473
    %v489 = vunpack.c.l.b16 %v474
    %v490 = vpack.c.b16 %v487, %v486
    %v491 = vpack.c.b16 %v489, %v488
    %v495 = vsel %vm187, %v470, 0
    %497 = vmatprep.subr.bf16.mxu0 0
    %498 = vmatpush1.bf16.msra.mxu0 %v490
    %499 = vmatprep.subr.bf16.mxu0 0
    %500 = vmatpush1.bf16.msra.mxu0 %v491
    %501 = vmatprep.subr.bf16.mxu0 0
    %502 = vmatpush1.bf16.msra.mxu0 0
    %503 = vmatprep.subr.bf16.mxu0 0
    %504 = vmatpush1.bf16.msra.mxu0 0
    %505 = vmatprep.subr.bf16.mxu0 0
    %506 = vmatpush1.bf16.msra.mxu0 0
    %507 = vmatprep.subr.bf16.mxu0 0
    %508 = vmatpush1.bf16.msra.mxu0 0
    %509 = vmatprep.subr.bf16.mxu0 0
    %510 = vmatpush1.bf16.msra.mxu0 0
    %511 = vmatprep.subr.bf16.mxu0 0
    %512 = vmatpush1.bf16.msra.mxu0 0
    %513 = vmatprep.subr.bf16.mxu0 0
    %514 = vmatpush1.bf16.msra.mxu0 0
    %515 = vmatprep.subr.bf16.mxu0 0
    %516 = vmatpush1.bf16.msra.mxu0 0
    %517 = vmatprep.subr.bf16.mxu0 0
    %518 = vmatpush1.bf16.msra.mxu0 0
    %519 = vmatprep.subr.bf16.mxu0 0
    %520 = vmatpush1.bf16.msra.mxu0 0
    %521 = vmatprep.subr.bf16.mxu0 0
    %522 = vmatpush1.bf16.msra.mxu0 0
    %523 = vmatprep.subr.bf16.mxu0 0
    %524 = vmatpush1.bf16.msra.mxu0 0
    %525 = vmatprep.subr.bf16.mxu0 0
    %526 = vmatpush1.bf16.msra.mxu0 0
    %527 = vmatprep.subr.bf16.mxu0 0
    %528 = vmatpush1.bf16.msra.mxu0 0
    %529 = vmatprep.mubr.bf16.mxu0 0
    %530 = vmatmul.mubr.bf16.gmra.mrb[0].mxu0 %v495
    %v531 = vpop.f32.mrb[0].mxu0
    %v532 = vadd.f32 %v480, %v531
    %v533 = vpop.f32.mrb[0].mxu0
    %v534 = vpop.f32.mrb[0].mxu0
    %v535 = vadd.f32 %v480, %v534
    %v536 = vpop.f32.mrb[0].mxu0
    %537 = vdwg.mxu0
    %v538 = vmax.f32 %v532, 0.0
    %v539 = vmax.f32 %v535, 0.0
    %v540 = vpack.c.bf16 %v539, %v538
    %v541 = vld [vmem:[#allocation14] sm:$0xf]
    %v542 = vld [vmem:[#allocation14 + $0x4] sm:$0xf]
    %v543 = vld [vmem:[#allocation14 + $0x8] sm:$0xf]
    %v544 = vld [vmem:[#allocation14 + $0xc] sm:$0xf]
    %v545 = vld [vmem:[%s13] sm:$0x1]
    %v547 = vlaneseq
    %v548 = vshrl.u32 %v547, 7
    %v549 = vsub.s32 0, %v548
    %v550 = vrot.slane %v545, %v549
    %v556 = vunpack.c.l.b16 %v541
    %v557 = vunpack.c.l.b16 %v542
    %v558 = vunpack.c.l.b16 %v543
    %v559 = vunpack.c.l.b16 %v544
    %v560 = vpack.c.b16 %v557, %v556
    %v561 = vpack.c.b16 %v559, %v558
    %v565 = vsel %vm187, %v540, 0
    %567 = vmatprep.subr.bf16.mxu0 0
    %568 = vmatpush1.bf16.msra.mxu0 %v560
    %569 = vmatprep.subr.bf16.mxu0 0
    %570 = vmatpush1.bf16.msra.mxu0 %v561
    %571 = vmatprep.subr.bf16.mxu0 0
    %572 = vmatpush1.bf16.msra.mxu0 0
    %573 = vmatprep.subr.bf16.mxu0 0
    %574 = vmatpush1.bf16.msra.mxu0 0
    %575 = vmatprep.subr.bf16.mxu0 0
    %576 = vmatpush1.bf16.msra.mxu0 0
    %577 = vmatprep.subr.bf16.mxu0 0
    %578 = vmatpush1.bf16.msra.mxu0 0
    %579 = vmatprep.subr.bf16.mxu0 0
    %580 = vmatpush1.bf16.msra.mxu0 0
    %581 = vmatprep.subr.bf16.mxu0 0
    %582 = vmatpush1.bf16.msra.mxu0 0
    %583 = vmatprep.subr.bf16.mxu0 0
    %584 = vmatpush1.bf16.msra.mxu0 0
    %585 = vmatprep.subr.bf16.mxu0 0
    %586 = vmatpush1.bf16.msra.mxu0 0
    %587 = vmatprep.subr.bf16.mxu0 0
    %588 = vmatpush1.bf16.msra.mxu0 0
    %589 = vmatprep.subr.bf16.mxu0 0
    %590 = vmatpush1.bf16.msra.mxu0 0
    %591 = vmatprep.subr.bf16.mxu0 0
    %592 = vmatpush1.bf16.msra.mxu0 0
    %593 = vmatprep.subr.bf16.mxu0 0
    %594 = vmatpush1.bf16.msra.mxu0 0
    %595 = vmatprep.subr.bf16.mxu0 0
    %596 = vmatpush1.bf16.msra.mxu0 0
    %597 = vmatprep.subr.bf16.mxu0 0
    %598 = vmatpush1.bf16.msra.mxu0 0
    %599 = vmatprep.mubr.bf16.mxu0 0
    %600 = vmatmul.mubr.bf16.gmra.mrb[0].mxu0 %v565
    %v601 = vpop.f32.mrb[0].mxu0
    %v602 = vadd.f32 %v550, %v601
    %v603 = vpop.f32.mrb[0].mxu0
    %v604 = vpop.f32.mrb[0].mxu0
    %v605 = vadd.f32 %v550, %v604
    %v606 = vpop.f32.mrb[0].mxu0
    %607 = vdwg.mxu0
    %v608 = vsel %vm156, %v602, -1e+30
    %v609 = vsel %vm156, %v605, -1e+30
    %610 = vmax.xlane.f32.xlu0 %v608
    %v611 = vpop.xlane.xlu0 %610
    %612 = vmax.xlane.f32.xlu0 %v609
    %v613 = vpop.xlane.xlu0 %612
    %v614 = vsub.f32 %v608, %v611
    %v615 = vsub.f32 %v609, %v613
    %v616 = vmul.f32 %v614, 1.442695
    %v617 = vpow.pop %v616
    %v618 = vmul.f32 %v615, 1.442695
    %v619 = vpow.pop %v618
    %v620 = vsel %vm156, %v617, 0.0
    %v621 = vsel %vm156, %v619, 0.0
    %622 = vadd.xlane.f32.xlu0 %v620
    %v623 = vpop.xlane.xlu0 %622
    %624 = vadd.xlane.f32.xlu0 %v621
    %v625 = vpop.xlane.xlu0 %624
    %v626 = vrcp.pop %v623
    %v627 = vrcp.pop %v625
    %v628 = vmul.f32 %v620, %v626
    %v629 = vmul.f32 %v621, %v627
    %v630 = vadd.f32 %v392, %v628
    %v631 = vadd.f32 %v393, %v629
    %v632 = vsel %vm156, %v630, -1e+30
    %v633 = vsel %vm156, %v631, -1e+30
    %634 = vmax.xlane.f32.xlu0 %v632
    %v635 = vpop.xlane.xlu0 %634
    %636 = vmax.xlane.f32.xlu0 %v633
    %v637 = vpop.xlane.xlu0 %636
    %v638 = vsub.f32 %v632, %v635
    %v639 = vsub.f32 %v633, %v637
    %v640 = vmul.f32 %v638, 1.442695
    %v641 = vpow.pop %v640
    %v642 = vmul.f32 %v639, 1.442695
    %v643 = vpow.pop %v642
    %v644 = vsel %vm156, %v641, 0.0
    %v645 = vsel %vm156, %v643, 0.0
    %646 = vadd.xlane.f32.xlu0 %v644
    %v647 = vpop.xlane.xlu0 %646
    %648 = vadd.xlane.f32.xlu0 %v645
    %v649 = vpop.xlane.xlu0 %648
    %v650 = vrcp.pop %v647
    %v651 = vmul.f32 %v644, %v650
    %v652 = vrcp.pop %v649
    %v653 = vmul.f32 %v645, %v652
    %654 = vst [vmem:[#allocation16] sm:$0xff] %v651
    %655 = vst [vmem:[#allocation16 + $0x8] sm:$0xff] %v653
    // Predicated region
    $region90: #{tpu_custom_call.1} parent=1 // pred_check
      _
    $region91: #{tpu_custom_call.1} parent=1 // pred_check_branch
      %657 = sbr.rel (0) target = $region93
    $region92: #{tpu_custom_call.1} parent=1 // pred_region
      %s659 = ssub.s32 256, 256
      %660 = vsyncadd [#allocation4], %s659
      %s661 = sshll.u32 [#allocation16], 4
      %s662 = int_to_ptr.vmem [resolvable:$true] %s661
      %667 = dma.vmem_to_hbm [thread:$0]  %s662, 256, %s14, [#allocation4], 128, 128, 8
    $region93: #{tpu_custom_call.1} parent=1 // pred_fallthru
      _
    // Predicated region
    $region94: #{tpu_custom_call.1} parent=1 // pred_check
      _
    $region95: #{tpu_custom_call.1} parent=1 // pred_check_branch
      %669 = sbr.rel (0) target = $region97
    $region96: #{tpu_custom_call.1} parent=1 // pred_region
      %670 = dma.done [#allocation4], 256
    $region97: #{tpu_custom_call.1} parent=1 // pred_fallthru
      _
    %671 = vsyncpa [#allocation3], 1
    %672 = vsyncpa [#allocation6], 1
    %673 = vsyncpa [#allocation9], 1
    %674 = vsyncpa [#allocation12], 1
    %675 = vsyncpa [#allocation15], 1
    %676 = vsyncpa [#allocation4], 1

// kernel: tpu_custom_call.1
$region0: #{tpu_custom_call.1}
  #allocation0 [shape = 'u32[]', space=smem, size = 0x4, offset = 0x4, fixed_abs, tag = 'smem constant byte address 0x4 - core index']
  #allocation1 [shape = 'u32[144,128]{1,0:T(1,128)}', space=vmem, size = 0x12000, scoped, tag = 'internal scratch']
  %s0 = inlined_call_operand.hbm [shape: bf16[16,32], index: 0, kind: input, shape index: {}]
  %s1 = inlined_call_operand.hbm [shape: bf16[16,32], index: 1, kind: input, shape index: {}]
  %s2 = inlined_call_operand.hbm [shape: bf16[32,32], index: 2, kind: input, shape index: {}]
  %s3 = inlined_call_operand.vmem [shape: f32[1,32], index: 3, kind: input, shape index: {}]
  %s4 = inlined_call_operand.hbm [shape: bf16[32,32], index: 4, kind: input, shape index: {}]
  %s5 = inlined_call_operand.vmem [shape: f32[1,32], index: 5, kind: input, shape index: {}]
  %s6 = inlined_call_operand.vmem [shape: bf16[32,32], index: 6, kind: input, shape index: {}]
  %s7 = inlined_call_operand.hbm [shape: f32[1,32], index: 7, kind: input, shape index: {}]
  %s8 = inlined_call_operand.hbm [shape: bf16[32,128], index: 8, kind: input, shape index: {}]
  %s9 = inlined_call_operand.hbm [shape: f32[1,128], index: 9, kind: input, shape index: {}]
  %s10 = inlined_call_operand.vmem [shape: bf16[32,32], index: 10, kind: input, shape index: {}]
  %s11 = inlined_call_operand.vmem [shape: f32[1,32], index: 11, kind: input, shape index: {}]
  %s12 = inlined_call_operand.hbm [shape: bf16[32,128], index: 12, kind: input, shape index: {}]
  %s13 = inlined_call_operand.vmem [shape: f32[1,128], index: 13, kind: input, shape index: {}]
  %s14 = inlined_call_operand.hbm [shape: f32[16,128], index: 14, kind: output, shape index: {}]
  %s15 = sld [smem:[#allocation0]]
  $region98: #{tpu_custom_call.1} parent=0
    _
  %s17 = ssub.s32 1, %s15
  %s18 = scalar_select 0, %s17, %s15
  $region1: #{tpu_custom_call.1} parent=0
    #allocation2 [shape = 'u8[4096]{0}', space=vmem, size = 0x1000, scoped, tag = 'input window, operand 0, single buffered']
    #allocation3 [shape = 's32[1]{0}', space=sflag, size = 0x4, scoped, tag = 'scoped memory for tpu_custom_call.1']
    #allocation4 [shape = 's32[1]{0}', space=sflag, size = 0x4, scoped, tag = 'scoped memory for tpu_custom_call.1']
    #allocation5 [shape = 'u8[4096]{0}', space=vmem, size = 0x1000, scoped, tag = 'input window, operand 1, single buffered']
    #allocation6 [shape = 's32[1]{0}', space=sflag, size = 0x4, scoped, tag = 'scoped memory for tpu_custom_call.1']
    #allocation7 [shape = 'u8[8192]{0}', space=vmem, size = 0x2000, scoped, tag = 'input window, operand 2, single buffered']
    #allocation8 [shape = 'u8[8192]{0}', space=vmem, size = 0x2000, scoped, tag = 'input window, operand 4, single buffered']
    #allocation9 [shape = 's32[1]{0}', space=sflag, size = 0x4, scoped, tag = 'scoped memory for tpu_custom_call.1']
    #allocation10 [shape = 'u8[512]{0}', space=vmem, size = 0x400, scoped, tag = 'input window, operand 7, single buffered']
    #allocation11 [shape = 'u8[8192]{0}', space=vmem, size = 0x2000, scoped, tag = 'input window, operand 8, single buffered']
    #allocation12 [shape = 's32[1]{0}', space=sflag, size = 0x4, scoped, tag = 'scoped memory for tpu_custom_call.1']
    #allocation13 [shape = 'u8[512]{0}', space=vmem, size = 0x400, scoped, tag = 'input window, operand 9, single buffered']
    #allocation14 [shape = 'u8[8192]{0}', space=vmem, size = 0x2000, scoped, tag = 'input window, operand 12, single buffered']
    #allocation15 [shape = 's32[1]{0}', space=sflag, size = 0x4, scoped, tag = 'scoped memory for tpu_custom_call.1']
    #allocation16 [shape = 'u8[8192]{0}', space=vmem, size = 0x2000, scoped, tag = 'output window, operand 0, single buffered']
    %19 = vsyncpa [#allocation3], 0
    %20 = vsyncpa [#allocation6], 0
    %21 = vsyncpa [#allocation9], 0
    %22 = vsyncpa [#allocation12], 0
    %23 = vsyncpa [#allocation15], 0
    %24 = vsyncpa [#allocation4], 0
    // Predicated region
    $region2: #{tpu_custom_call.1} parent=1 // pred_check
      _
    $region3: #{tpu_custom_call.1} parent=1 // pred_check_branch
      %26 = sbr.rel (0) target = $region5
    $region4: #{tpu_custom_call.1} parent=1 // pred_region
      %s28 = ssub.s32 128, 128
      %29 = vsyncadd [#allocation3], %s28
      %s30 = sshll.u32 [#allocation2], 4
      %s31 = int_to_ptr.vmem [resolvable:$true] %s30
      %36 = dma.hbm_to_vmem [thread:$0]  %s0, 128, %s31, [#allocation3], 64, 64, 4
    $region5: #{tpu_custom_call.1} parent=1 // pred_fallthru
      _
    // Predicated region
    $region6: #{tpu_custom_call.1} parent=1 // pred_check
      _
    $region7: #{tpu_custom_call.1} parent=1 // pred_check_branch
      %38 = sbr.rel (0) target = $region9
    $region8: #{tpu_custom_call.1} parent=1 // pred_region
      %s40 = ssub.s32 128, 128
      %41 = vsyncadd [#allocation6], %s40
      %s42 = sshll.u32 [#allocation5], 4
      %s43 = int_to_ptr.vmem [resolvable:$true] %s42
      %48 = dma.hbm_to_vmem [thread:$0]  %s1, 128, %s43, [#allocation6], 64, 64, 4
    $region9: #{tpu_custom_call.1} parent=1 // pred_fallthru
      _
    // Predicated region
    $region10: #{tpu_custom_call.1} parent=1 // pred_check
      _
    $region11: #{tpu_custom_call.1} parent=1 // pred_check_branch
      %50 = sbr.rel (0) target = $region13
    $region12: #{tpu_custom_call.1} parent=1 // pred_region
      %s52 = ssub.s32 256, 256
      %53 = vsyncadd [#allocation6], %s52
      %s54 = sshll.u32 [#allocation7], 4
      %s55 = int_to_ptr.vmem [resolvable:$true] %s54
      %60 = dma.hbm_to_vmem [thread:$0]  %s2, 256, %s55, [#allocation6], 64, 64, 4
    $region13: #{tpu_custom_call.1} parent=1 // pred_fallthru
      _
    // Predicated region
    $region14: #{tpu_custom_call.1} parent=1 // pred_check
      _
    $region15: #{tpu_custom_call.1} parent=1 // pred_check_branch
      %62 = sbr.rel (0) target = $region17
    $region16: #{tpu_custom_call.1} parent=1 // pred_region
      _
    $region17: #{tpu_custom_call.1} parent=1 // pred_fallthru
      _
    // Predicated region
    $region18: #{tpu_custom_call.1} parent=1 // pred_check
      _
    $region19: #{tpu_custom_call.1} parent=1 // pred_check_branch
      %64 = sbr.rel (0) target = $region21
    $region20: #{tpu_custom_call.1} parent=1 // pred_region
      %s66 = ssub.s32 256, 256
      %67 = vsyncadd [#allocation9], %s66
      %s68 = sshll.u32 [#allocation8], 4
      %s69 = int_to_ptr.vmem [resolvable:$true] %s68
      %74 = dma.hbm_to_vmem [thread:$0]  %s4, 256, %s69, [#allocation9], 64, 64, 4
    $region21: #{tpu_custom_call.1} parent=1 // pred_fallthru
      _
    // Predicated region
    $region22: #{tpu_custom_call.1} parent=1 // pred_check
      _
    $region23: #{tpu_custom_call.1} parent=1 // pred_check_branch
      %76 = sbr.rel (0) target = $region25
    $region24: #{tpu_custom_call.1} parent=1 // pred_region
      _
    $region25: #{tpu_custom_call.1} parent=1 // pred_fallthru
      _
    // Predicated region
    $region26: #{tpu_custom_call.1} parent=1 // pred_check
      _
    $region27: #{tpu_custom_call.1} parent=1 // pred_check_branch
      %78 = sbr.rel (0) target = $region29
    $region28: #{tpu_custom_call.1} parent=1 // pred_region
      _
    $region29: #{tpu_custom_call.1} parent=1 // pred_fallthru
      _
    // Predicated region
    $region30: #{tpu_custom_call.1} parent=1 // pred_check
      _
    $region31: #{tpu_custom_call.1} parent=1 // pred_check_branch
      %80 = sbr.rel (0) target = $region33
    $region32: #{tpu_custom_call.1} parent=1 // pred_region
      %s82 = ssub.s32 16, 16
      %83 = vsyncadd [#allocation9], %s82
      %s85 = sshll.u32 [#allocation10], 4
      %s86 = int_to_ptr.vmem [resolvable:$true] %s85
      %88 = dma.hbm_to_vmem [thread:$0]  %s7, 16, %s86, [#allocation9]
    $region33: #{tpu_custom_call.1} parent=1 // pred_fallthru
      _
    // Predicated region
    $region34: #{tpu_custom_call.1} parent=1 // pred_check
      _
    $region35: #{tpu_custom_call.1} parent=1 // pred_check_branch
      %90 = sbr.rel (0) target = $region37
    $region36: #{tpu_custom_call.1} parent=1 // pred_region
      %s92 = ssub.s32 256, 256
      %93 = vsyncadd [#allocation12], %s92
      %s94 = sshll.u32 [#allocation11], 4
      %s95 = int_to_ptr.vmem [resolvable:$true] %s94
      %100 = dma.hbm_to_vmem [thread:$0]  %s8, 256, %s95, [#allocation12], 64, 64, 4
    $region37: #{tpu_custom_call.1} parent=1 // pred_fallthru
      _
    // Predicated region
    $region38: #{tpu_custom_call.1} parent=1 // pred_check
      _
    $region39: #{tpu_custom_call.1} parent=1 // pred_check_branch
      %102 = sbr.rel (0) target = $region41
    $region40: #{tpu_custom_call.1} parent=1 // pred_region
      %s104 = ssub.s32 16, 16
      %105 = vsyncadd [#allocation12], %s104
      %s107 = sshll.u32 [#allocation13], 4
      %s108 = int_to_ptr.vmem [resolvable:$true] %s107
      %110 = dma.hbm_to_vmem [thread:$0]  %s9, 16, %s108, [#allocation12]
    $region41: #{tpu_custom_call.1} parent=1 // pred_fallthru
      _
    // Predicated region
    $region42: #{tpu_custom_call.1} parent=1 // pred_check
      _
    $region43: #{tpu_custom_call.1} parent=1 // pred_check_branch
      %112 = sbr.rel (0) target = $region45
    $region44: #{tpu_custom_call.1} parent=1 // pred_region
      _
    $region45: #{tpu_custom_call.1} parent=1 // pred_fallthru
      _
    // Predicated region
    $region46: #{tpu_custom_call.1} parent=1 // pred_check
      _
    $region47: #{tpu_custom_call.1} parent=1 // pred_check_branch
      %114 = sbr.rel (0) target = $region49
    $region48: #{tpu_custom_call.1} parent=1 // pred_region
      _
    $region49: #{tpu_custom_call.1} parent=1 // pred_fallthru
      _
    // Predicated region
    $region50: #{tpu_custom_call.1} parent=1 // pred_check
      _
    $region51: #{tpu_custom_call.1} parent=1 // pred_check_branch
      %116 = sbr.rel (0) target = $region53
    $region52: #{tpu_custom_call.1} parent=1 // pred_region
      %s118 = ssub.s32 256, 256
      %119 = vsyncadd [#allocation15], %s118
      %s120 = sshll.u32 [#allocation14], 4
      %s121 = int_to_ptr.vmem [resolvable:$true] %s120
      %126 = dma.hbm_to_vmem [thread:$0]  %s12, 256, %s121, [#allocation15], 64, 64, 4
    $region53: #{tpu_custom_call.1} parent=1 // pred_fallthru
      _
    // Predicated region
    $region54: #{tpu_custom_call.1} parent=1 // pred_check
      _
    $region55: #{tpu_custom_call.1} parent=1 // pred_check_branch
      %128 = sbr.rel (0) target = $region57
    $region56: #{tpu_custom_call.1} parent=1 // pred_region
      _
    $region57: #{tpu_custom_call.1} parent=1 // pred_fallthru
      _
    // Predicated region
    $region58: #{tpu_custom_call.1} parent=1 // pred_check
      _
    $region59: #{tpu_custom_call.1} parent=1 // pred_check_branch
      %130 = sbr.rel (0) target = $region61
    $region60: #{tpu_custom_call.1} parent=1 // pred_region
      %131 = dma.done [#allocation3], 128
    $region61: #{tpu_custom_call.1} parent=1 // pred_fallthru
      _
    // Predicated region
    $region62: #{tpu_custom_call.1} parent=1 // pred_check
      _
    $region63: #{tpu_custom_call.1} parent=1 // pred_check_branch
      %133 = sbr.rel (0) target = $region65
    $region64: #{tpu_custom_call.1} parent=1 // pred_region
      %134 = dma.done [#allocation6], 128
    $region65: #{tpu_custom_call.1} parent=1 // pred_fallthru
      _
    // Predicated region
    $region66: #{tpu_custom_call.1} parent=1 // pred_check
      _
    $region67: #{tpu_custom_call.1} parent=1 // pred_check_branch
      %136 = sbr.rel (0) target = $region69
    $region68: #{tpu_custom_call.1} parent=1 // pred_region
      %137 = dma.done [#allocation6], 256
    $region69: #{tpu_custom_call.1} parent=1 // pred_fallthru
      _
    // Predicated region
    $region70: #{tpu_custom_call.1} parent=1 // pred_check
      _
    $region71: #{tpu_custom_call.1} parent=1 // pred_check_branch
      %139 = sbr.rel (0) target = $region73
    $region72: #{tpu_custom_call.1} parent=1 // pred_region
      %140 = dma.done [#allocation9], 256
    $region73: #{tpu_custom_call.1} parent=1 // pred_fallthru
      _
    // Predicated region
    $region74: #{tpu_custom_call.1} parent=1 // pred_check
      _
    $region75: #{tpu_custom_call.1} parent=1 // pred_check_branch
      %142 = sbr.rel (0) target = $region77
    $region76: #{tpu_custom_call.1} parent=1 // pred_region
      %143 = dma.done [#allocation9], 16
    $region77: #{tpu_custom_call.1} parent=1 // pred_fallthru
      _
    // Predicated region
    $region78: #{tpu_custom_call.1} parent=1 // pred_check
      _
    $region79: #{tpu_custom_call.1} parent=1 // pred_check_branch
      %145 = sbr.rel (0) target = $region81
    $region80: #{tpu_custom_call.1} parent=1 // pred_region
      %146 = dma.done [#allocation12], 256
    $region81: #{tpu_custom_call.1} parent=1 // pred_fallthru
      _
    // Predicated region
    $region82: #{tpu_custom_call.1} parent=1 // pred_check
      _
    $region83: #{tpu_custom_call.1} parent=1 // pred_check_branch
      %148 = sbr.rel (0) target = $region85
    $region84: #{tpu_custom_call.1} parent=1 // pred_region
      %149 = dma.done [#allocation12], 16
    $region85: #{tpu_custom_call.1} parent=1 // pred_fallthru
      _
    // Predicated region
    $region86: #{tpu_custom_call.1} parent=1 // pred_check
      _
    $region87: #{tpu_custom_call.1} parent=1 // pred_check_branch
      %151 = sbr.rel (0) target = $region89
    $region88: #{tpu_custom_call.1} parent=1 // pred_region
      %152 = dma.done [#allocation15], 256
    $region89: #{tpu_custom_call.1} parent=1 // pred_fallthru
      _
    %v154 = vlaneseq
    %v155 = vand.u32 %v154, 127
    %vm156 = vcmp.lt.s32.totalorder %v155, 4
    %v157 = vld [vmem:[#allocation2] sm:$0xf]
    %v158 = vld [vmem:[#allocation2 + $0x4] sm:$0xf]
    %v159 = vld [vmem:[#allocation7] sm:$0xf]
    %v160 = vld [vmem:[#allocation7 + $0x4] sm:$0xf]
    %v161 = vld [vmem:[#allocation7 + $0x8] sm:$0xf]
    %v162 = vld [vmem:[#allocation7 + $0xc] sm:$0xf]
    %v163 = vld [vmem:[%s3] sm:$0x1]
    %v165 = vlaneseq
    %v166 = vshrl.u32 %v165, 7
    %v167 = vsub.s32 0, %v166
    %v168 = vrot.slane %v163, %v167
    %v172 = vunpack.c.l.b16 %v157
    %v173 = vunpack.c.l.b16 %v158
    %v174 = vpack.c.b16 %v173, %v172
    %v179 = vunpack.c.l.b16 %v159
    %v180 = vunpack.c.l.b16 %v160
    %v181 = vunpack.c.l.b16 %v161
    %v182 = vunpack.c.l.b16 %v162
    %v183 = vpack.c.b16 %v180, %v179
    %v184 = vpack.c.b16 %v182, %v181
    %vm187 = vcmask 261120
    %v189 = vsel %vm187, %v174, 0
    %191 = vmatprep.subr.bf16.mxu0 0
    %192 = vmatpush1.bf16.msra.mxu0 %v183
    %193 = vmatprep.subr.bf16.mxu0 0
    %194 = vmatpush1.bf16.msra.mxu0 %v184
    %195 = vmatprep.subr.bf16.mxu0 0
    %196 = vmatpush1.bf16.msra.mxu0 0
    %197 = vmatprep.subr.bf16.mxu0 0
    %198 = vmatpush1.bf16.msra.mxu0 0
    %199 = vmatprep.subr.bf16.mxu0 0
    %200 = vmatpush1.bf16.msra.mxu0 0
    %201 = vmatprep.subr.bf16.mxu0 0
    %202 = vmatpush1.bf16.msra.mxu0 0
    %203 = vmatprep.subr.bf16.mxu0 0
    %204 = vmatpush1.bf16.msra.mxu0 0
    %205 = vmatprep.subr.bf16.mxu0 0
    %206 = vmatpush1.bf16.msra.mxu0 0
    %207 = vmatprep.subr.bf16.mxu0 0
    %208 = vmatpush1.bf16.msra.mxu0 0
    %209 = vmatprep.subr.bf16.mxu0 0
    %210 = vmatpush1.bf16.msra.mxu0 0
    %211 = vmatprep.subr.bf16.mxu0 0
    %212 = vmatpush1.bf16.msra.mxu0 0
    %213 = vmatprep.subr.bf16.mxu0 0
    %214 = vmatpush1.bf16.msra.mxu0 0
    %215 = vmatprep.subr.bf16.mxu0 0
    %216 = vmatpush1.bf16.msra.mxu0 0
    %217 = vmatprep.subr.bf16.mxu0 0
    %218 = vmatpush1.bf16.msra.mxu0 0
    %219 = vmatprep.subr.bf16.mxu0 0
    %220 = vmatpush1.bf16.msra.mxu0 0
    %221 = vmatprep.subr.bf16.mxu0 0
    %222 = vmatpush1.bf16.msra.mxu0 0
    %223 = vmatprep.mubr.bf16.mxu0 0
    %224 = vmatmul.mubr.bf16.gmra.mrb[0].mxu0 %v189
    %v225 = vpop.f32.mrb[0].mxu0
    %v226 = vadd.f32 %v168, %v225
    %v227 = vpop.f32.mrb[0].mxu0
    %v228 = vpop.f32.mrb[0].mxu0
    %v229 = vadd.f32 %v168, %v228
    %v230 = vpop.f32.mrb[0].mxu0
    %231 = vdwg.mxu0
    %v232 = vmax.f32 %v226, 0.0
    %v233 = vmax.f32 %v229, 0.0
    %v234 = vpack.c.bf16 %v233, %v232
    %v235 = vld [vmem:[%s6] sm:$0xf]
    %v236 = vld [vmem:[%s6 + $0x4] sm:$0xf]
    %v237 = vld [vmem:[%s6 + $0x8] sm:$0xf]
    %v238 = vld [vmem:[%s6 + $0xc] sm:$0xf]
    %v239 = vld [vmem:[#allocation10] sm:$0x1]
    %v241 = vlaneseq
    %v242 = vshrl.u32 %v241, 7
    %v243 = vsub.s32 0, %v242
    %v244 = vrot.slane %v239, %v243
    %v250 = vunpack.c.l.b16 %v235
    %v251 = vunpack.c.l.b16 %v236
    %v252 = vunpack.c.l.b16 %v237
    %v253 = vunpack.c.l.b16 %v238
    %v254 = vpack.c.b16 %v251, %v250
    %v255 = vpack.c.b16 %v253, %v252
    %v259 = vsel %vm187, %v234, 0
    %261 = vmatprep.subr.bf16.mxu0 0
    %262 = vmatpush1.bf16.msra.mxu0 %v254
    %263 = vmatprep.subr.bf16.mxu0 0
    %264 = vmatpush1.bf16.msra.mxu0 %v255
    %265 = vmatprep.subr.bf16.mxu0 0
    %266 = vmatpush1.bf16.msra.mxu0 0
    %267 = vmatprep.subr.bf16.mxu0 0
    %268 = vmatpush1.bf16.msra.mxu0 0
    %269 = vmatprep.subr.bf16.mxu0 0
    %270 = vmatpush1.bf16.msra.mxu0 0
    %271 = vmatprep.subr.bf16.mxu0 0
    %272 = vmatpush1.bf16.msra.mxu0 0
    %273 = vmatprep.subr.bf16.mxu0 0
    %274 = vmatpush1.bf16.msra.mxu0 0
    %275 = vmatprep.subr.bf16.mxu0 0
    %276 = vmatpush1.bf16.msra.mxu0 0
    %277 = vmatprep.subr.bf16.mxu0 0
    %278 = vmatpush1.bf16.msra.mxu0 0
    %279 = vmatprep.subr.bf16.mxu0 0
    %280 = vmatpush1.bf16.msra.mxu0 0
    %281 = vmatprep.subr.bf16.mxu0 0
    %282 = vmatpush1.bf16.msra.mxu0 0
    %283 = vmatprep.subr.bf16.mxu0 0
    %284 = vmatpush1.bf16.msra.mxu0 0
    %285 = vmatprep.subr.bf16.mxu0 0
    %286 = vmatpush1.bf16.msra.mxu0 0
    %287 = vmatprep.subr.bf16.mxu0 0
    %288 = vmatpush1.bf16.msra.mxu0 0
    %289 = vmatprep.subr.bf16.mxu0 0
    %290 = vmatpush1.bf16.msra.mxu0 0
    %291 = vmatprep.subr.bf16.mxu0 0
    %292 = vmatpush1.bf16.msra.mxu0 0
    %293 = vmatprep.mubr.bf16.mxu0 0
    %294 = vmatmul.mubr.bf16.gmra.mrb[0].mxu0 %v259
    %v295 = vpop.f32.mrb[0].mxu0
    %v296 = vadd.f32 %v244, %v295
    %v297 = vpop.f32.mrb[0].mxu0
    %v298 = vpop.f32.mrb[0].mxu0
    %v299 = vadd.f32 %v244, %v298
    %v300 = vpop.f32.mrb[0].mxu0
    %301 = vdwg.mxu0
    %v302 = vmax.f32 %v296, 0.0
    %v303 = vmax.f32 %v299, 0.0
    %v304 = vpack.c.bf16 %v303, %v302
    %v305 = vld [vmem:[#allocation11] sm:$0xf]
    %v306 = vld [vmem:[#allocation11 + $0x4] sm:$0xf]
    %v307 = vld [vmem:[#allocation11 + $0x8] sm:$0xf]
    %v308 = vld [vmem:[#allocation11 + $0xc] sm:$0xf]
    %v309 = vld [vmem:[#allocation13] sm:$0x1]
    %v311 = vlaneseq
    %v312 = vshrl.u32 %v311, 7
    %v313 = vsub.s32 0, %v312
    %v314 = vrot.slane %v309, %v313
    %v320 = vunpack.c.l.b16 %v305
    %v321 = vunpack.c.l.b16 %v306
    %v322 = vunpack.c.l.b16 %v307
    %v323 = vunpack.c.l.b16 %v308
    %v324 = vpack.c.b16 %v321, %v320
    %v325 = vpack.c.b16 %v323, %v322
    %v329 = vsel %vm187, %v304, 0
    %331 = vmatprep.subr.bf16.mxu0 0
    %332 = vmatpush1.bf16.msra.mxu0 %v324
    %333 = vmatprep.subr.bf16.mxu0 0
    %334 = vmatpush1.bf16.msra.mxu0 %v325
    %335 = vmatprep.subr.bf16.mxu0 0
    %336 = vmatpush1.bf16.msra.mxu0 0
    %337 = vmatprep.subr.bf16.mxu0 0
    %338 = vmatpush1.bf16.msra.mxu0 0
    %339 = vmatprep.subr.bf16.mxu0 0
    %340 = vmatpush1.bf16.msra.mxu0 0
    %341 = vmatprep.subr.bf16.mxu0 0
    %342 = vmatpush1.bf16.msra.mxu0 0
    %343 = vmatprep.subr.bf16.mxu0 0
    %344 = vmatpush1.bf16.msra.mxu0 0
    %345 = vmatprep.subr.bf16.mxu0 0
    %346 = vmatpush1.bf16.msra.mxu0 0
    %347 = vmatprep.subr.bf16.mxu0 0
    %348 = vmatpush1.bf16.msra.mxu0 0
    %349 = vmatprep.subr.bf16.mxu0 0
    %350 = vmatpush1.bf16.msra.mxu0 0
    %351 = vmatprep.subr.bf16.mxu0 0
    %352 = vmatpush1.bf16.msra.mxu0 0
    %353 = vmatprep.subr.bf16.mxu0 0
    %354 = vmatpush1.bf16.msra.mxu0 0
    %355 = vmatprep.subr.bf16.mxu0 0
    %356 = vmatpush1.bf16.msra.mxu0 0
    %357 = vmatprep.subr.bf16.mxu0 0
    %358 = vmatpush1.bf16.msra.mxu0 0
    %359 = vmatprep.subr.bf16.mxu0 0
    %360 = vmatpush1.bf16.msra.mxu0 0
    %361 = vmatprep.subr.bf16.mxu0 0
    %362 = vmatpush1.bf16.msra.mxu0 0
    %363 = vmatprep.mubr.bf16.mxu0 0
    %364 = vmatmul.mubr.bf16.gmra.mrb[0].mxu0 %v329
    %v365 = vpop.f32.mrb[0].mxu0
    %v366 = vadd.f32 %v314, %v365
    %v367 = vpop.f32.mrb[0].mxu0
    %v368 = vpop.f32.mrb[0].mxu0
    %v369 = vadd.f32 %v314, %v368
    %v370 = vpop.f32.mrb[0].mxu0
    %371 = vdwg.mxu0
    %v372 = vsel %vm156, %v366, -1e+30
    %v373 = vsel %vm156, %v369, -1e+30
    %374 = vmax.xlane.f32.xlu0 %v372
    %v375 = vpop.xlane.xlu0 %374
    %376 = vmax.xlane.f32.xlu0 %v373
    %v377 = vpop.xlane.xlu0 %376
    %v378 = vsub.f32 %v372, %v375
    %v379 = vsub.f32 %v373, %v377
    %v380 = vmul.f32 %v378, 1.442695
    %v381 = vpow.pop %v380
    %v382 = vmul.f32 %v379, 1.442695
    %v383 = vpow.pop %v382
    %v384 = vsel %vm156, %v381, 0.0
    %v385 = vsel %vm156, %v383, 0.0
    %386 = vadd.xlane.f32.xlu0 %v384
    %v387 = vpop.xlane.xlu0 %386
    %388 = vadd.xlane.f32.xlu0 %v385
    %v389 = vpop.xlane.xlu0 %388
    %v390 = vrcp.pop %v387
    %v391 = vrcp.pop %v389
    %v392 = vmul.f32 %v384, %v390
    %v393 = vmul.f32 %v385, %v391
    %v394 = vld [vmem:[#allocation5] sm:$0xf]
    %v395 = vld [vmem:[#allocation5 + $0x4] sm:$0xf]
    %v396 = vld [vmem:[#allocation8] sm:$0xf]
    %v397 = vld [vmem:[#allocation8 + $0x4] sm:$0xf]
    %v398 = vld [vmem:[#allocation8 + $0x8] sm:$0xf]
    %v399 = vld [vmem:[#allocation8 + $0xc] sm:$0xf]
    %v400 = vld [vmem:[%s5] sm:$0x1]
    %v402 = vlaneseq
    %v403 = vshrl.u32 %v402, 7
    %v404 = vsub.s32 0, %v403
    %v405 = vrot.slane %v400, %v404
    %v409 = vunpack.c.l.b16 %v394
    %v410 = vunpack.c.l.b16 %v395
    %v411 = vpack.c.b16 %v410, %v409
    %v416 = vunpack.c.l.b16 %v396
    %v417 = vunpack.c.l.b16 %v397
    %v418 = vunpack.c.l.b16 %v398
    %v419 = vunpack.c.l.b16 %v399
    %v420 = vpack.c.b16 %v417, %v416
    %v421 = vpack.c.b16 %v419, %v418
    %v425 = vsel %vm187, %v411, 0
    %427 = vmatprep.subr.bf16.mxu0 0
    %428 = vmatpush1.bf16.msra.mxu0 %v420
    %429 = vmatprep.subr.bf16.mxu0 0
    %430 = vmatpush1.bf16.msra.mxu0 %v421
    %431 = vmatprep.subr.bf16.mxu0 0
    %432 = vmatpush1.bf16.msra.mxu0 0
    %433 = vmatprep.subr.bf16.mxu0 0
    %434 = vmatpush1.bf16.msra.mxu0 0
    %435 = vmatprep.subr.bf16.mxu0 0
    %436 = vmatpush1.bf16.msra.mxu0 0
    %437 = vmatprep.subr.bf16.mxu0 0
    %438 = vmatpush1.bf16.msra.mxu0 0
    %439 = vmatprep.subr.bf16.mxu0 0
    %440 = vmatpush1.bf16.msra.mxu0 0
    %441 = vmatprep.subr.bf16.mxu0 0
    %442 = vmatpush1.bf16.msra.mxu0 0
    %443 = vmatprep.subr.bf16.mxu0 0
    %444 = vmatpush1.bf16.msra.mxu0 0
    %445 = vmatprep.subr.bf16.mxu0 0
    %446 = vmatpush1.bf16.msra.mxu0 0
    %447 = vmatprep.subr.bf16.mxu0 0
    %448 = vmatpush1.bf16.msra.mxu0 0
    %449 = vmatprep.subr.bf16.mxu0 0
    %450 = vmatpush1.bf16.msra.mxu0 0
    %451 = vmatprep.subr.bf16.mxu0 0
    %452 = vmatpush1.bf16.msra.mxu0 0
    %453 = vmatprep.subr.bf16.mxu0 0
    %454 = vmatpush1.bf16.msra.mxu0 0
    %455 = vmatprep.subr.bf16.mxu0 0
    %456 = vmatpush1.bf16.msra.mxu0 0
    %457 = vmatprep.subr.bf16.mxu0 0
    %458 = vmatpush1.bf16.msra.mxu0 0
    %459 = vmatprep.mubr.bf16.mxu0 0
    %460 = vmatmul.mubr.bf16.gmra.mrb[0].mxu0 %v425
    %v461 = vpop.f32.mrb[0].mxu0
    %v462 = vadd.f32 %v405, %v461
    %v463 = vpop.f32.mrb[0].mxu0
    %v464 = vpop.f32.mrb[0].mxu0
    %v465 = vadd.f32 %v405, %v464
    %v466 = vpop.f32.mrb[0].mxu0
    %467 = vdwg.mxu0
    %v468 = vmax.f32 %v462, 0.0
    %v469 = vmax.f32 %v465, 0.0
    %v470 = vpack.c.bf16 %v469, %v468
    %v471 = vld [vmem:[%s10] sm:$0xf]
    %v472 = vld [vmem:[%s10 + $0x4] sm:$0xf]
    %v473 = vld [vmem:[%s10 + $0x8] sm:$0xf]
    %v474 = vld [vmem:[%s10 + $0xc] sm:$0xf]
    %v475 = vld [vmem:[%s11] sm:$0x1]
    %v477 = vlaneseq
    %v478 = vshrl.u32 %v477, 7
    %v479 = vsub.s32 0, %v478
    %v480 = vrot.slane %v475, %v479
    %v486 = vunpack.c.l.b16 %v471
    %v487 = vunpack.c.l.b16 %v472
    %v488 = vunpack.c.l.b16 %v473
    %v489 = vunpack.c.l.b16 %v474
    %v490 = vpack.c.b16 %v487, %v486
    %v491 = vpack.c.b16 %v489, %v488
    %v495 = vsel %vm187, %v470, 0
    %497 = vmatprep.subr.bf16.mxu0 0
    %498 = vmatpush1.bf16.msra.mxu0 %v490
    %499 = vmatprep.subr.bf16.mxu0 0
    %500 = vmatpush1.bf16.msra.mxu0 %v491
    %501 = vmatprep.subr.bf16.mxu0 0
    %502 = vmatpush1.bf16.msra.mxu0 0
    %503 = vmatprep.subr.bf16.mxu0 0
    %504 = vmatpush1.bf16.msra.mxu0 0
    %505 = vmatprep.subr.bf16.mxu0 0
    %506 = vmatpush1.bf16.msra.mxu0 0
    %507 = vmatprep.subr.bf16.mxu0 0
    %508 = vmatpush1.bf16.msra.mxu0 0
    %509 = vmatprep.subr.bf16.mxu0 0
    %510 = vmatpush1.bf16.msra.mxu0 0
    %511 = vmatprep.subr.bf16.mxu0 0
    %512 = vmatpush1.bf16.msra.mxu0 0
    %513 = vmatprep.subr.bf16.mxu0 0
    %514 = vmatpush1.bf16.msra.mxu0 0
    %515 = vmatprep.subr.bf16.mxu0 0
    %516 = vmatpush1.bf16.msra.mxu0 0
    %517 = vmatprep.subr.bf16.mxu0 0
    %518 = vmatpush1.bf16.msra.mxu0 0
    %519 = vmatprep.subr.bf16.mxu0 0
    %520 = vmatpush1.bf16.msra.mxu0 0
    %521 = vmatprep.subr.bf16.mxu0 0
    %522 = vmatpush1.bf16.msra.mxu0 0
    %523 = vmatprep.subr.bf16.mxu0 0
    %524 = vmatpush1.bf16.msra.mxu0 0
    %525 = vmatprep.subr.bf16.mxu0 0
    %526 = vmatpush1.bf16.msra.mxu0 0
    %527 = vmatprep.subr.bf16.mxu0 0
    %528 = vmatpush1.bf16.msra.mxu0 0
    %529 = vmatprep.mubr.bf16.mxu0 0
    %530 = vmatmul.mubr.bf16.gmra.mrb[0].mxu0 %v495
    %v531 = vpop.f32.mrb[0].mxu0
    %v532 = vadd.f32 %v480, %v531
    %v533 = vpop.f32.mrb[0].mxu0
    %v534 = vpop.f32.mrb[0].mxu0
    %v535 = vadd.f32 %v480, %v534
    %v536 = vpop.f32.mrb[0].mxu0
    %537 = vdwg.mxu0
    %v538 = vmax.f32 %v532, 0.0
    %v539 = vmax.f32 %v535, 0.0
    %v540 = vpack.c.bf16 %v539, %v538
    %v541 = vld [vmem:[#allocation14] sm:$0xf]
    %v542 = vld [vmem:[#allocation14 + $0x4] sm:$0xf]
    %v543 = vld [vmem:[#allocation14 + $0x8] sm:$0xf]
    %v544 = vld [vmem:[#allocation14 + $0xc] sm:$0xf]
    %v545 = vld [vmem:[%s13] sm:$0x1]
    %v547 = vlaneseq
    %v548 = vshrl.u32 %v547, 7
    %v549 = vsub.s32 0, %v548
    %v550 = vrot.slane %v545, %v549
    %v556 = vunpack.c.l.b16 %v541
    %v557 = vunpack.c.l.b16 %v542
    %v558 = vunpack.c.l.b16 %v543
    %v559 = vunpack.c.l.b16 %v544
    %v560 = vpack.c.b16 %v557, %v556
    %v561 = vpack.c.b16 %v559, %v558
    %v565 = vsel %vm187, %v540, 0
    %567 = vmatprep.subr.bf16.mxu0 0
    %568 = vmatpush1.bf16.msra.mxu0 %v560
    %569 = vmatprep.subr.bf16.mxu0 0
    %570 = vmatpush1.bf16.msra.mxu0 %v561
    %571 = vmatprep.subr.bf16.mxu0 0
    %572 = vmatpush1.bf16.msra.mxu0 0
    %573 = vmatprep.subr.bf16.mxu0 0
    %574 = vmatpush1.bf16.msra.mxu0 0
    %575 = vmatprep.subr.bf16.mxu0 0
    %576 = vmatpush1.bf16.msra.mxu0 0
    %577 = vmatprep.subr.bf16.mxu0 0
    %578 = vmatpush1.bf16.msra.mxu0 0
    %579 = vmatprep.subr.bf16.mxu0 0
    %580 = vmatpush1.bf16.msra.mxu0 0
    %581 = vmatprep.subr.bf16.mxu0 0
    %582 = vmatpush1.bf16.msra.mxu0 0
    %583 = vmatprep.subr.bf16.mxu0 0
    %584 = vmatpush1.bf16.msra.mxu0 0
    %585 = vmatprep.subr.bf16.mxu0 0
    %586 = vmatpush1.bf16.msra.mxu0 0
    %587 = vmatprep.subr.bf16.mxu0 0
    %588 = vmatpush1.bf16.msra.mxu0 0
    %589 = vmatprep.subr.bf16.mxu0 0
    %590 = vmatpush1.bf16.msra.mxu0 0
    %591 = vmatprep.subr.bf16.mxu0 0
    %592 = vmatpush1.bf16.msra.mxu0 0
    %593 = vmatprep.subr.bf16.mxu0 0
    %594 = vmatpush1.bf16.msra.mxu0 0
    %595 = vmatprep.subr.bf16.mxu0 0
    %596 = vmatpush1.bf16.msra.mxu0 0
    %597 = vmatprep.subr.bf16.mxu0 0
    %598 = vmatpush1.bf16.msra.mxu0 0
    %599 = vmatprep.mubr.bf16.mxu0 0
    %600 = vmatmul.mubr.bf16.gmra.mrb[0].mxu0 %v565
    %v601 = vpop.f32.mrb[0].mxu0
    %v602 = vadd.f32 %v550, %v601
    %v603 = vpop.f32.mrb[0].mxu0
    %v604 = vpop.f32.mrb[0].mxu0
    %v605 = vadd.f32 %v550, %v604
    %v606 = vpop.f32.mrb[0].mxu0
    %607 = vdwg.mxu0
    %v608 = vsel %vm156, %v602, -1e+30
    %v609 = vsel %vm156, %v605, -1e+30
    %610 = vmax.xlane.f32.xlu0 %v608
    %v611 = vpop.xlane.xlu0 %610
    %612 = vmax.xlane.f32.xlu0 %v609
    %v613 = vpop.xlane.xlu0 %612
    %v614 = vsub.f32 %v608, %v611
    %v615 = vsub.f32 %v609, %v613
    %v616 = vmul.f32 %v614, 1.442695
    %v617 = vpow.pop %v616
    %v618 = vmul.f32 %v615, 1.442695
    %v619 = vpow.pop %v618
    %v620 = vsel %vm156, %v617, 0.0
    %v621 = vsel %vm156, %v619, 0.0
    %622 = vadd.xlane.f32.xlu0 %v620
    %v623 = vpop.xlane.xlu0 %622
    %624 = vadd.xlane.f32.xlu0 %v621
    %v625 = vpop.xlane.xlu0 %624
    %v626 = vrcp.pop %v623
    %v627 = vrcp.pop %v625
    %v628 = vmul.f32 %v620, %v626
    %v629 = vmul.f32 %v621, %v627
    %v630 = vadd.f32 %v392, %v628
    %v631 = vadd.f32 %v393, %v629
    %v632 = vsel %vm156, %v630, -1e+30
    %v633 = vsel %vm156, %v631, -1e+30
    %634 = vmax.xlane.f32.xlu0 %v632
    %v635 = vpop.xlane.xlu0 %634
    %636 = vmax.xlane.f32.xlu0 %v633
    %v637 = vpop.xlane.xlu0 %636
    %v638 = vsub.f32 %v632, %v635
    %v639 = vsub.f32 %v633, %v637
    %v640 = vmul.f32 %v638, 1.442695
    %v641 = vpow.pop %v640
    %v642 = vmul.f32 %v639, 1.442695
    %v643 = vpow.pop %v642
    %v644 = vsel %vm156, %v641, 0.0
    %v645 = vsel %vm156, %v643, 0.0
    %646 = vadd.xlane.f32.xlu0 %v644
    %v647 = vpop.xlane.xlu0 %646
    %648 = vadd.xlane.f32.xlu0 %v645
    %v649 = vpop.xlane.xlu0 %648
    %v650 = vrcp.pop %v647
    %v651 = vmul.f32 %v644, %v650
    %v652 = vrcp.pop %v649
    %v653 = vmul.f32 %v645, %v652
    %654 = vst [vmem:[#allocation16] sm:$0xff] %v651
    %655 = vst [vmem:[#allocation16 + $0x8] sm:$0xff] %v653
    // Predicated region
    $region90: #{tpu_custom_call.1} parent=1 // pred_check
      _
    $region91: #{tpu_custom_call.1} parent=1 // pred_check_branch
      %657 = sbr.rel (0) target = $region93
    $region92: #{tpu_custom_call.1} parent=1 // pred_region
      %s659 = ssub.s32 256, 256
      %660 = vsyncadd [#allocation4], %s659
      %s661 = sshll.u32 [#allocation16], 4
      %s662 = int_to_ptr.vmem [resolvable:$true] %s661
      %667 = dma.vmem_to_hbm [thread:$0]  %s662, 256, %s14, [#allocation4], 128, 128, 8
    $region93: #{tpu_custom_call.1} parent=1 // pred_fallthru
      _
    // Predicated region
    $region94: #{tpu_custom_call.1} parent=1 // pred_check
      _
    $region95: #{tpu_custom_call.1} parent=1 // pred_check_branch
      %669 = sbr.rel (0) target = $region97
    $region96: #{tpu_custom_call.1} parent=1 // pred_region
      %670 = dma.done [#allocation4], 256
    $region97: #{tpu_custom_call.1} parent=1 // pred_fallthru
      _
    %671 = vsyncpa [#allocation3], 1
    %672 = vsyncpa [#allocation6], 1
    %673 = vsyncpa [#allocation9], 1
    %674 = vsyncpa [#allocation12], 1
    %675 = vsyncpa [#allocation15], 1
    %676 = vsyncpa [#allocation4], 1

</llo_original>
